<compile_context>
chip_gen: v7x
topology: tpu7x:2x2x1
jax: 0.10.0
libtpu: 0.0.40
codegen_flags: <defaults>
</compile_context>

<pallas_src>
import functools

import numpy as np

import jax
import jax.numpy as jnp
from jax.experimental import pallas as pl
from jax.experimental.pallas import tpu as pltpu


def _round_up(x: int, m: int) -> int:
    return (x + m - 1) // m * m


# ----------------------------------------------------------------------------
# Fused forward kernel: chain of (bf16 matmul + f32 bias [+ f32 ReLU]) layers,
# all operands resident in VMEM.  Layer n-2 output (the fc_net features "x")
# and layer n-1 output (critic value) are both written.
# ----------------------------------------------------------------------------
def _make_fused_kernel(num_layers: int, inv_scale: float):
    def kernel(*refs):
        x_ref = refs[0]
        wb_refs = refs[1:1 + 2 * num_layers]
        feat_ref, value_ref = refs[-2], refs[-1]

        h = x_ref[...] * jnp.float32(inv_scale)          # inputs / 255.0, f32
        for li in range(num_layers):
            w_ref = wb_refs[2 * li]                      # bf16 weights
            b_ref = wb_refs[2 * li + 1]                  # f32 bias (1, N)
            y = jnp.dot(h.astype(jnp.bfloat16), w_ref[...],
                        preferred_element_type=jnp.float32)
            y = y + b_ref[...]                           # f32 bias add
            if li < num_layers - 1:
                h = jnp.maximum(y, 0.0)                  # f32 ReLU
                if li == num_layers - 2:                 # fc_net output ("x")
                    feat_ref[...] = h
            else:                                        # critic (no ReLU)
                value_ref[...] = y

    return kernel


# ----------------------------------------------------------------------------
# Parameter preparation (host-side, once): fold convs into dense matrices on
# the flattened NCHW activation, pre-transpose FC/critic weights, zero-pad
# every N dimension up to a multiple of 128, store matmul weights as bf16.
# ----------------------------------------------------------------------------
def _conv_as_dense(weight, bias, in_h, in_w, stride):
    """flat_in(NCHW) @ T + b_flat == flat_out(NCHW) for a padding=0 conv."""
    oc, ic, kh, kw = weight.shape
    oh = (in_h - kh) // stride + 1
    ow = (in_w - kw) // stride + 1
    t = np.zeros((ic * in_h * in_w, oc * oh * ow), np.float32)
    for o in range(oc):
        for c in range(ic):
            for i in range(kh):
                for j in range(kw):
                    val = weight[o, c, i, j]
                    for yy in range(oh):
                        row_base = c * in_h * in_w + (yy * stride + i) * in_w + j
                        col_base = o * oh * ow + yy * ow
                        for xx in range(ow):
                            t[row_base + xx * stride, col_base + xx] = val
    b_flat = np.repeat(np.asarray(bias, np.float32), oh * ow)
    return t, b_flat, oh, ow


def _pad2d(a, rows, cols):
    out = np.zeros((rows, cols), np.float32)
    out[:a.shape[0], :a.shape[1]] = a
    return out


def prepare_matmul_params(params, *, num_inputs, cnn_layers, num_fc, input_hw,
                          weight_dtype=jnp.bfloat16):
    h, w = input_hw
    in_ch = num_inputs
    real = in_ch * h * w
    padded = _round_up(real, 128)
    mats = []
    for li, (oc, k, s, p) in enumerate(cnn_layers):
        assert p == 0, "only padding=0 supported in this script"
        t, b_flat, oh, ow = _conv_as_dense(
            np.asarray(params[f"conv{li}_w"], np.float32),
            np.asarray(params[f"conv{li}_b"], np.float32), h, w, s)
        out_real = oc * oh * ow
        out_pad = _round_up(out_real, 128)
        mats.append((jnp.asarray(_pad2d(t, padded, out_pad), dtype=weight_dtype),
                     jnp.asarray(_pad2d(b_flat[None, :], 1, out_pad),
                                 dtype=jnp.float32)))
        real, padded = out_real, out_pad
        h, w, in_ch = oh, ow, oc
    for li in range(num_fc):
        wt = np.asarray(params[f"fc{li}_w"], np.float32).T      # (in, out)
        bt = np.asarray(params[f"fc{li}_b"], np.float32)
        out_real = wt.shape[1]
        out_pad = _round_up(out_real, 128)
        mats.append((jnp.asarray(_pad2d(wt, padded, out_pad), dtype=weight_dtype),
                     jnp.asarray(_pad2d(bt[None, :], 1, out_pad),
                                 dtype=jnp.float32)))
        real, padded = out_real, out_pad
    wc = np.asarray(params["critic_w"], np.float32).T            # (in, out)
    bc = np.asarray(params["critic_b"], np.float32)
    out_real = wc.shape[1]
    out_pad = _round_up(out_real, 128)
    mats.append((jnp.asarray(_pad2d(wc, padded, out_pad), dtype=weight_dtype),
                 jnp.asarray(_pad2d(bc[None, :], 1, out_pad), dtype=jnp.float32)))
    feat_dim = real            # width of the last fc layer output
    value_dim = out_real       # critic output width (obj_num or 1)
    return tuple(mats), feat_dim, value_dim


# ----------------------------------------------------------------------------
# FlexibleCNNBase parameters (deterministic orthogonal init, zero biases),
# torch layouts: conv (OC, IC, KH, KW), linear (out, in).
# ----------------------------------------------------------------------------
def init_params(key,
                num_inputs=4,
                cnn_layers=((8, 4, 2, 0), (16, 3, 1, 0)),
                cnn_final_layers=(32,),
                obj_num=1,
                input_hw=(16, 16)):
    params = {}
    orth_relu = jax.nn.initializers.orthogonal(scale=jnp.sqrt(2.0))
    orth_fc = jax.nn.initializers.orthogonal(scale=jnp.sqrt(2.0))
    orth_out = jax.nn.initializers.orthogonal(scale=1.0)

    keys = jax.random.split(key, len(cnn_layers) + len(cnn_final_layers) + 1)
    ki = 0

    in_ch = num_inputs
    h, w = input_hw
    for li, (oc, k, s, p) in enumerate(cnn_layers):
        params[f"conv{li}_w"] = orth_relu(keys[ki], (oc, in_ch, k, k), jnp.float32)
        params[f"conv{li}_b"] = jnp.zeros((oc,), jnp.float32)
        ki += 1
        h = (h - k) // s + 1
        w = (w - k) // s + 1
        in_ch = oc
    conv_output_size = in_ch * h * w

    fc_sizes = [conv_output_size] + list(cnn_final_layers)
    for li in range(len(fc_sizes) - 1):
        params[f"fc{li}_w"] = orth_fc(keys[ki], (fc_sizes[li + 1], fc_sizes[li]),
                                      jnp.float32)
        params[f"fc{li}_b"] = jnp.zeros((fc_sizes[li + 1],), jnp.float32)
        ki += 1

    out_dim = obj_num if obj_num > 1 else 1
    params["critic_w"] = orth_out(keys[ki], (out_dim, fc_sizes[-1]), jnp.float32)
    params["critic_b"] = jnp.zeros((out_dim,), jnp.float32)
    return params


# ----------------------------------------------------------------------------
# Forward: returns (critic_linear(x), x, rnn_hxs) like the PyTorch module.
# ----------------------------------------------------------------------------
@functools.partial(jax.jit, static_argnames=("feat_dim", "value_dim"))
def flexible_cnn_forward(mats, inputs, rnn_hxs, masks, *, feat_dim, value_dim):
    del masks  # only used by the recurrent GRU branch (recurrent=False here)
    B = inputs.shape[0]
    x = inputs.reshape(B, -1).astype(jnp.float32)     # NCHW flatten (torch .view)

    k_in = mats[0][0].shape[0]                        # padded input width (x128)
    if x.shape[1] != k_in:                            # not taken for this config
        x = jnp.pad(x, ((0, 0), (0, k_in - x.shape[1])))

    # Row-tile heuristic: sublane-aligned, up to 512 rows per tile, and >= 2
    # grid steps whenever the batch allows so the "parallel" axis shards
    # across v7x's two TensorCores.
    m8 = _round_up(B, 8)
    if m8 <= 8:
        tm = 8
    elif m8 <= 1024:
        tm = min(512, _round_up(pl.cdiv(m8, 2), 8))
    else:
        tm = 512
    grid_m = pl.cdiv(m8, tm)
    m_out = grid_m * tm                               # row-padded output rows

    n_layers = len(mats)
    in_specs = [pl.BlockSpec((tm, k_in), lambda i: (i, 0))]
    args = [x]
    for w, b in mats:
        in_specs.append(pl.BlockSpec(w.shape, lambda i: (0, 0)))   # VMEM-resident
        in_specs.append(pl.BlockSpec(b.shape, lambda i: (0, 0)))
        args += [w, b]

    feat_n = mats[-2][0].shape[1]
    val_n = mats[-1][0].shape[1]

    flops = 2 * m_out * sum(int(w.shape[0]) * int(w.shape[1]) for w, _ in mats)
    bytes_accessed = (
        x.size * x.dtype.itemsize
        + sum(w.size * w.dtype.itemsize + b.size * b.dtype.itemsize
              for w, b in mats)
        + m_out * (feat_n + val_n) * 4)

    feat_p, value_p = pl.pallas_call(
        _make_fused_kernel(n_layers, 1.0 / 255.0),
        out_shape=(jax.ShapeDtypeStruct((m_out, feat_n), jnp.float32),
                   jax.ShapeDtypeStruct((m_out, val_n), jnp.float32)),
        grid=(grid_m,),
        in_specs=in_specs,
        out_specs=(pl.BlockSpec((tm, feat_n), lambda i: (i, 0)),
                   pl.BlockSpec((tm, val_n), lambda i: (i, 0))),
        compiler_params=pltpu.CompilerParams(
            dimension_semantics=("parallel",)),
        cost_estimate=pl.CostEstimate(flops=flops, transcendentals=0,
                                      bytes_accessed=bytes_accessed),
    )(*args)

    value = value_p[:B, :value_dim]
    feat = feat_p[:B, :feat_dim]
    return value, feat, rnn_hxs


# ----------------------------------------------------------------------------
# Pure-JAX references of the PyTorch forward (correctness checking only).
#   bf16_weights=True  -> mirrors the kernel's numerics policy exactly.
#   bf16_weights=False -> full-f32 HIGHEST-precision module semantics.
# ----------------------------------------------------------------------------
def _reference_forward(params, inputs, cnn_layers, num_fc, *, bf16_weights):
    prec = None if bf16_weights else jax.lax.Precision.HIGHEST
    wcast = (lambda a: a.astype(jnp.bfloat16)) if bf16_weights else (lambda a: a)
    acast = wcast
    x = inputs.astype(jnp.float32) * jnp.float32(1.0 / 255.0)
    for li, (oc, k, s, p) in enumerate(cnn_layers):
        x = jax.lax.conv_general_dilated(
            acast(x), wcast(params[f"conv{li}_w"]), window_strides=(s, s),
            padding="VALID", dimension_numbers=("NCHW", "OIHW", "NCHW"),
            precision=prec, preferred_element_type=jnp.float32)
        x = jnp.maximum(x + params[f"conv{li}_b"].reshape(1, -1, 1, 1), 0.0)
    x = x.reshape(x.shape[0], -1)
    for li in range(num_fc):
        x = jnp.maximum(
            jnp.dot(acast(x), wcast(params[f"fc{li}_w"]).T, precision=prec,
                    preferred_element_type=jnp.float32) + params[f"fc{li}_b"],
            0.0)
    v = jnp.dot(acast(x), wcast(params["critic_w"]).T, precision=prec,
                preferred_element_type=jnp.float32) + params["critic_b"]
    return v, x


if __name__ == "__main__":
    key = jax.random.PRNGKey(0)
    k_param, k_input = jax.random.split(key)

    num_inputs = 4
    cnn_layers = ((8, 4, 2, 0), (16, 3, 1, 0))
    cnn_final_layers = (32,)
    input_hw = (16, 16)

    params = init_params(k_param, num_inputs=num_inputs, cnn_layers=cnn_layers,
                         cnn_final_layers=cnn_final_layers, obj_num=1,
                         input_hw=input_hw)
    mats, feat_dim, value_dim = prepare_matmul_params(
        params, num_inputs=num_inputs, cnn_layers=cnn_layers,
        num_fc=len(cnn_final_layers), input_hw=input_hw)

    B = 2
    inputs = jax.random.uniform(k_input, (B, num_inputs, *input_hw),
                                jnp.float32, minval=0.0, maxval=255.0)
    rnn_hxs = jnp.zeros((B, 1), jnp.float32)   # recurrent_hidden_state_size == 1
    masks = jnp.ones((B, 1), jnp.float32)

    value, feat, hxs_out = flexible_cnn_forward(
        mats, inputs, rnn_hxs, masks, feat_dim=feat_dim, value_dim=value_dim)
    jax.block_until_ready((value, feat, hxs_out))

    assert value.shape == (B, 1)
    assert feat.shape == (B, cnn_final_layers[-1])
    assert hxs_out.shape == rnn_hxs.shape
    assert bool(jnp.all(jnp.isfinite(value))) and bool(jnp.all(jnp.isfinite(feat)))

    # Reference with identical bf16-weight numerics (tight tolerance).
    v_b, f_b = _reference_forward(params, inputs, cnn_layers,
                                  len(cnn_final_layers), bf16_weights=True)
    assert jnp.allclose(value, v_b, atol=5e-3, rtol=5e-3)
    assert jnp.allclose(feat, f_b, atol=5e-3, rtol=5e-3)

    # Full-f32 module semantics (looser tolerance: bf16 weight quantization).
    v_ref, f_ref = _reference_forward(params, inputs, cnn_layers,
                                      len(cnn_final_layers), bf16_weights=False)
    assert jnp.allclose(value, v_ref, atol=5e-2, rtol=5e-2)
    assert jnp.allclose(feat, f_ref, atol=5e-2, rtol=5e-2)

    print("KERNEL_OK")
</pallas_src>

<mosaic_0001>
module attributes {stable_mosaic.version = 11 : i64} {
  func.func @kernel(%arg0: i32, %arg1: memref<8x1024xf32, #tpu.memory_space<vmem>>, %arg2: memref<1024x512xbf16, #tpu.memory_space<vmem>>, %arg3: memref<1x512xf32, #tpu.memory_space<vmem>>, %arg4: memref<512x512xbf16, #tpu.memory_space<vmem>>, %arg5: memref<1x512xf32, #tpu.memory_space<vmem>>, %arg6: memref<512x128xbf16, #tpu.memory_space<vmem>>, %arg7: memref<1x128xf32, #tpu.memory_space<vmem>>, %arg8: memref<128x128xbf16, #tpu.memory_space<vmem>>, %arg9: memref<1x128xf32, #tpu.memory_space<vmem>>, %arg10: memref<8x128xf32, #tpu.memory_space<vmem>>, %arg11: memref<8x128xf32, #tpu.memory_space<vmem>>) attributes {dimension_semantics = [#tpu.dimension_semantics<parallel>], iteration_bounds = array<i64: 1>, scalar_prefetch = 0 : i64, scratch_operands = 0 : i64, tpu.core_type = #tpu.core_type<tc>, window_params = [{transform_indices = @transform_0, window_bounds = array<i64: 8, 1024>}, {pipeline_mode = #tpu.pipeline_mode<synchronous>, transform_indices = @transform_1, window_bounds = array<i64: 1024, 512>}, {pipeline_mode = #tpu.pipeline_mode<synchronous>, transform_indices = @transform_2, window_bounds = array<i64: 1, 512>}, {pipeline_mode = #tpu.pipeline_mode<synchronous>, transform_indices = @transform_3, window_bounds = array<i64: 512, 512>}, {pipeline_mode = #tpu.pipeline_mode<synchronous>, transform_indices = @transform_4, window_bounds = array<i64: 1, 512>}, {pipeline_mode = #tpu.pipeline_mode<synchronous>, transform_indices = @transform_5, window_bounds = array<i64: 512, 128>}, {pipeline_mode = #tpu.pipeline_mode<synchronous>, transform_indices = @transform_6, window_bounds = array<i64: 1, 128>}, {pipeline_mode = #tpu.pipeline_mode<synchronous>, transform_indices = @transform_7, window_bounds = array<i64: 128, 128>}, {pipeline_mode = #tpu.pipeline_mode<synchronous>, transform_indices = @transform_8, window_bounds = array<i64: 1, 128>}, {transform_indices = @transform_9, window_bounds = array<i64: 8, 128>}, {transform_indices = @transform_10, window_bounds = array<i64: 8, 128>}]} {
    %c0 = arith.constant 0 : index
    %c0_0 = arith.constant 0 : index
    %0 = vector.load %arg1[%c0, %c0_0] : memref<8x1024xf32, #tpu.memory_space<vmem>>, vector<8x1024xf32>
    %cst = arith.constant 0.00392156886 : f32
    %1 = vector.broadcast %cst : f32 to vector<8x1024xf32>
    %2 = arith.mulf %0, %1 : vector<8x1024xf32>
    %3 = arith.truncf %2 : vector<8x1024xf32> to vector<8x1024xbf16>
    %c0_1 = arith.constant 0 : index
    %c0_2 = arith.constant 0 : index
    %4 = vector.load %arg2[%c0_1, %c0_2] : memref<1024x512xbf16, #tpu.memory_space<vmem>>, vector<1024x512xbf16>
    %cst_3 = arith.constant dense<0.000000e+00> : vector<8x512xf32>
    %5 = tpu.matmul %3, %4, %cst_3 {dimension_numbers = #tpu.dot_dimension_numbers<[1], [0], [0], [1], [0, 0, 1, 1], [], []>} : vector<8x1024xbf16>, vector<1024x512xbf16>, vector<8x512xf32> -> vector<8x512xf32>
    %c0_4 = arith.constant 0 : index
    %c0_5 = arith.constant 0 : index
    %6 = vector.load %arg3[%c0_4, %c0_5] : memref<1x512xf32, #tpu.memory_space<vmem>>, vector<1x512xf32>
    %7 = vector.broadcast %6 : vector<1x512xf32> to vector<8x512xf32>
    %8 = arith.addf %5, %7 : vector<8x512xf32>
    %cst_6 = arith.constant 0.000000e+00 : f32
    %9 = vector.broadcast %cst_6 : f32 to vector<8x512xf32>
    %10 = arith.maximumf %8, %9 : vector<8x512xf32>
    %11 = arith.truncf %10 : vector<8x512xf32> to vector<8x512xbf16>
    %c0_7 = arith.constant 0 : index
    %c0_8 = arith.constant 0 : index
    %12 = vector.load %arg4[%c0_7, %c0_8] : memref<512x512xbf16, #tpu.memory_space<vmem>>, vector<512x512xbf16>
    %cst_9 = arith.constant dense<0.000000e+00> : vector<8x512xf32>
    %13 = tpu.matmul %11, %12, %cst_9 {dimension_numbers = #tpu.dot_dimension_numbers<[1], [0], [0], [1], [0, 0, 1, 1], [], []>} : vector<8x512xbf16>, vector<512x512xbf16>, vector<8x512xf32> -> vector<8x512xf32>
    %c0_10 = arith.constant 0 : index
    %c0_11 = arith.constant 0 : index
    %14 = vector.load %arg5[%c0_10, %c0_11] : memref<1x512xf32, #tpu.memory_space<vmem>>, vector<1x512xf32>
    %15 = vector.broadcast %14 : vector<1x512xf32> to vector<8x512xf32>
    %16 = arith.addf %13, %15 : vector<8x512xf32>
    %cst_12 = arith.constant 0.000000e+00 : f32
    %17 = vector.broadcast %cst_12 : f32 to vector<8x512xf32>
    %18 = arith.maximumf %16, %17 : vector<8x512xf32>
    %19 = arith.truncf %18 : vector<8x512xf32> to vector<8x512xbf16>
    %c0_13 = arith.constant 0 : index
    %c0_14 = arith.constant 0 : index
    %20 = vector.load %arg6[%c0_13, %c0_14] : memref<512x128xbf16, #tpu.memory_space<vmem>>, vector<512x128xbf16>
    %cst_15 = arith.constant dense<0.000000e+00> : vector<8x128xf32>
    %21 = tpu.matmul %19, %20, %cst_15 {dimension_numbers = #tpu.dot_dimension_numbers<[1], [0], [0], [1], [0, 0, 1, 1], [], []>} : vector<8x512xbf16>, vector<512x128xbf16>, vector<8x128xf32> -> vector<8x128xf32>
    %c0_16 = arith.constant 0 : index
    %c0_17 = arith.constant 0 : index
    %22 = vector.load %arg7[%c0_16, %c0_17] : memref<1x128xf32, #tpu.memory_space<vmem>>, vector<1x128xf32>
    %23 = vector.broadcast %22 : vector<1x128xf32> to vector<8x128xf32>
    %24 = arith.addf %21, %23 : vector<8x128xf32>
    %cst_18 = arith.constant 0.000000e+00 : f32
    %25 = vector.broadcast %cst_18 : f32 to vector<8x128xf32>
    %26 = arith.maximumf %24, %25 : vector<8x128xf32>
    %c0_19 = arith.constant 0 : index
    %c0_20 = arith.constant 0 : index
    %27 = vector.load %arg10[%c0_19, %c0_20] : memref<8x128xf32, #tpu.memory_space<vmem>>, vector<8x128xf32>
    tpu.vector_store %arg10[%c0_19, %c0_20], %26 {strides = array<i32>} : memref<8x128xf32, #tpu.memory_space<vmem>>, vector<8x128xf32>,
    %28 = arith.truncf %26 : vector<8x128xf32> to vector<8x128xbf16>
    %c0_21 = arith.constant 0 : index
    %c0_22 = arith.constant 0 : index
    %29 = vector.load %arg8[%c0_21, %c0_22] : memref<128x128xbf16, #tpu.memory_space<vmem>>, vector<128x128xbf16>
    %cst_23 = arith.constant dense<0.000000e+00> : vector<8x128xf32>
    %30 = tpu.matmul %28, %29, %cst_23 {dimension_numbers = #tpu.dot_dimension_numbers<[1], [0], [0], [1], [0, 0, 1, 1], [], []>} : vector<8x128xbf16>, vector<128x128xbf16>, vector<8x128xf32> -> vector<8x128xf32>
    %c0_24 = arith.constant 0 : index
    %c0_25 = arith.constant 0 : index
    %31 = vector.load %arg9[%c0_24, %c0_25] : memref<1x128xf32, #tpu.memory_space<vmem>>, vector<1x128xf32>
    %32 = vector.broadcast %31 : vector<1x128xf32> to vector<8x128xf32>
    %33 = arith.addf %30, %32 : vector<8x128xf32>
    %c0_26 = arith.constant 0 : index
    %c0_27 = arith.constant 0 : index
    %34 = vector.load %arg11[%c0_26, %c0_27] : memref<8x128xf32, #tpu.memory_space<vmem>>, vector<8x128xf32>
    tpu.vector_store %arg11[%c0_26, %c0_27], %33 {strides = array<i32>} : memref<8x128xf32, #tpu.memory_space<vmem>>, vector<8x128xf32>,
    return
  }
  func.func @transform_0(%arg0: i32) -> (i32, i32) {
    %c0_i32 = arith.constant 0 : i32
    %c0_i32_0 = arith.constant 0 : i32
    return %arg0, %c0_i32 : i32, i32
  }
  func.func @transform_1(%arg0: i32) -> (i32, i32) {
    %c0_i32 = arith.constant 0 : i32
    %c0_i32_0 = arith.constant 0 : i32
    %c0_i32_1 = arith.constant 0 : i32
    return %c0_i32, %c0_i32_0 : i32, i32
  }
  func.func @transform_2(%arg0: i32) -> (i32, i32) {
    %c0_i32 = arith.constant 0 : i32
    %c0_i32_0 = arith.constant 0 : i32
    %c0_i32_1 = arith.constant 0 : i32
    return %c0_i32, %c0_i32_0 : i32, i32
  }
  func.func @transform_3(%arg0: i32) -> (i32, i32) {
    %c0_i32 = arith.constant 0 : i32
    %c0_i32_0 = arith.constant 0 : i32
    %c0_i32_1 = arith.constant 0 : i32
    return %c0_i32, %c0_i32_0 : i32, i32
  }
  func.func @transform_4(%arg0: i32) -> (i32, i32) {
    %c0_i32 = arith.constant 0 : i32
    %c0_i32_0 = arith.constant 0 : i32
    %c0_i32_1 = arith.constant 0 : i32
    return %c0_i32, %c0_i32_0 : i32, i32
  }
  func.func @transform_5(%arg0: i32) -> (i32, i32) {
    %c0_i32 = arith.constant 0 : i32
    %c0_i32_0 = arith.constant 0 : i32
    %c0_i32_1 = arith.constant 0 : i32
    return %c0_i32, %c0_i32_0 : i32, i32
  }
  func.func @transform_6(%arg0: i32) -> (i32, i32) {
    %c0_i32 = arith.constant 0 : i32
    %c0_i32_0 = arith.constant 0 : i32
    %c0_i32_1 = arith.constant 0 : i32
    return %c0_i32, %c0_i32_0 : i32, i32
  }
  func.func @transform_7(%arg0: i32) -> (i32, i32) {
    %c0_i32 = arith.constant 0 : i32
    %c0_i32_0 = arith.constant 0 : i32
    %c0_i32_1 = arith.constant 0 : i32
    return %c0_i32, %c0_i32_0 : i32, i32
  }
  func.func @transform_8(%arg0: i32) -> (i32, i32) {
    %c0_i32 = arith.constant 0 : i32
    %c0_i32_0 = arith.constant 0 : i32
    %c0_i32_1 = arith.constant 0 : i32
    return %c0_i32, %c0_i32_0 : i32, i32
  }
  func.func @transform_9(%arg0: i32) -> (i32, i32) {
    %c0_i32 = arith.constant 0 : i32
    %c0_i32_0 = arith.constant 0 : i32
    return %arg0, %c0_i32 : i32, i32
  }
  func.func @transform_10(%arg0: i32) -> (i32, i32) {
    %c0_i32 = arith.constant 0 : i32
    %c0_i32_0 = arith.constant 0 : i32
    return %arg0, %c0_i32 : i32, i32
  }
}

</mosaic_0001>

<llo_original>
// kernel: flexible_cnn_forward.1
$region0: #{flexible_cnn_forward.1}
  #allocation0 [shape = 'u32[]', space=smem, size = 0x4, offset = 0x4, fixed_abs, tag = 'smem constant byte address 0x4 - core index']
  #allocation1 [shape = 'u32[144,128]{1,0:T(1,128)}', space=vmem, size = 0x12000, scoped, tag = 'internal scratch']
  %s0 = inlined_call_operand.vmem [shape: f32[2,1024], index: 0, kind: input, shape index: {}]
  %s1 = inlined_call_operand.hbm [shape: bf16[1024,512], index: 1, kind: input, shape index: {}]
  %s2 = inlined_call_operand.vmem [shape: f32[1,512], index: 2, kind: input, shape index: {}]
  %s3 = inlined_call_operand.hbm [shape: bf16[512,512], index: 3, kind: input, shape index: {}]
  %s4 = inlined_call_operand.vmem [shape: f32[1,512], index: 4, kind: input, shape index: {}]
  %s5 = inlined_call_operand.hbm [shape: bf16[512,128], index: 5, kind: input, shape index: {}]
  %s6 = inlined_call_operand.vmem [shape: f32[1,128], index: 6, kind: input, shape index: {}]
  %s7 = inlined_call_operand.vmem [shape: bf16[128,128], index: 7, kind: input, shape index: {}]
  %s8 = inlined_call_operand.vmem [shape: f32[1,128], index: 8, kind: input, shape index: {}]
  %s9 = inlined_call_operand.vmem [shape: f32[8,128], index: 9, kind: output, shape index: {0}]
  %s10 = inlined_call_operand.vmem [shape: f32[8,128], index: 10, kind: output, shape index: {1}]
  %11 = xla_tuple %s9, %s10
  %s12 = sld [smem:[#allocation0]]
  $region66: #{flexible_cnn_forward.1} parent=0
    _
  %s14 = ssub.s32 1, %s12
  %s15 = scalar_select 0, %s14, %s12
  $region1: #{flexible_cnn_forward.1} parent=0
    #allocation2 [shape = 'u8[1048576]{0}', space=vmem, size = 0x100000, scoped, tag = 'input window, operand 1, single buffered']
    #allocation3 [shape = 's32[1]{0}', space=sflag, size = 0x4, scoped, tag = 'scoped memory for flexible_cnn_forward.1']
    #allocation4 [shape = 'u8[524288]{0}', space=vmem, size = 0x80000, scoped, tag = 'input window, operand 3, single buffered']
    #allocation5 [shape = 's32[1]{0}', space=sflag, size = 0x4, scoped, tag = 'scoped memory for flexible_cnn_forward.1']
    #allocation6 [shape = 'u8[131072]{0}', space=vmem, size = 0x20000, scoped, tag = 'input window, operand 5, single buffered']
    %16 = vsyncpa [#allocation3], 0
    %17 = vsyncpa [#allocation5], 0
    // Predicated region
    $region2: #{flexible_cnn_forward.1} parent=1 // pred_check
      _
    $region3: #{flexible_cnn_forward.1} parent=1 // pred_check_branch
      %19 = sbr.rel (0) target = $region5
    $region4: #{flexible_cnn_forward.1} parent=1 // pred_region
      _
    $region5: #{flexible_cnn_forward.1} parent=1 // pred_fallthru
      _
    // Predicated region
    $region6: #{flexible_cnn_forward.1} parent=1 // pred_check
      _
    $region7: #{flexible_cnn_forward.1} parent=1 // pred_check_branch
      %21 = sbr.rel (0) target = $region9
    $region8: #{flexible_cnn_forward.1} parent=1 // pred_region
      %s23 = ssub.s32 32768, 32768
      %24 = vsyncadd [#allocation3], %s23
      %s25 = sshll.u32 [#allocation2], 4
      %s26 = int_to_ptr.vmem [resolvable:$true] %s25
      %31 = dma.hbm_to_vmem [thread:$0]  %s1, 32768, %s26, [#allocation3], 256, 256, 16
    $region9: #{flexible_cnn_forward.1} parent=1 // pred_fallthru
      _
    // Predicated region
    $region10: #{flexible_cnn_forward.1} parent=1 // pred_check
      _
    $region11: #{flexible_cnn_forward.1} parent=1 // pred_check_branch
      %33 = sbr.rel (0) target = $region13
    $region12: #{flexible_cnn_forward.1} parent=1 // pred_region
      _
    $region13: #{flexible_cnn_forward.1} parent=1 // pred_fallthru
      _
    // Predicated region
    $region14: #{flexible_cnn_forward.1} parent=1 // pred_check
      _
    $region15: #{flexible_cnn_forward.1} parent=1 // pred_check_branch
      %35 = sbr.rel (0) target = $region17
    $region16: #{flexible_cnn_forward.1} parent=1 // pred_region
      %s37 = ssub.s32 16384, 16384
      %38 = vsyncadd [#allocation5], %s37
      %s39 = sshll.u32 [#allocation4], 4
      %s40 = int_to_ptr.vmem [resolvable:$true] %s39
      %45 = dma.hbm_to_vmem [thread:$0]  %s3, 16384, %s40, [#allocation5], 256, 256, 16
    $region17: #{flexible_cnn_forward.1} parent=1 // pred_fallthru
      _
    // Predicated region
    $region18: #{flexible_cnn_forward.1} parent=1 // pred_check
      _
    $region19: #{flexible_cnn_forward.1} parent=1 // pred_check_branch
      %47 = sbr.rel (0) target = $region21
    $region20: #{flexible_cnn_forward.1} parent=1 // pred_region
      _
    $region21: #{flexible_cnn_forward.1} parent=1 // pred_fallthru
      _
    // Predicated region
    $region22: #{flexible_cnn_forward.1} parent=1 // pred_check
      _
    $region23: #{flexible_cnn_forward.1} parent=1 // pred_check_branch
      %49 = sbr.rel (0) target = $region25
    $region24: #{flexible_cnn_forward.1} parent=1 // pred_region
      %s51 = ssub.s32 4096, 4096
      %52 = vsyncadd [#allocation5], %s51
      %s53 = sshll.u32 [#allocation6], 4
      %s54 = int_to_ptr.vmem [resolvable:$true] %s53
      %59 = dma.hbm_to_vmem [thread:$0]  %s5, 4096, %s54, [#allocation5], 64, 64, 4
    $region25: #{flexible_cnn_forward.1} parent=1 // pred_fallthru
      _
    // Predicated region
    $region26: #{flexible_cnn_forward.1} parent=1 // pred_check
      _
    $region27: #{flexible_cnn_forward.1} parent=1 // pred_check_branch
      %61 = sbr.rel (0) target = $region29
    $region28: #{flexible_cnn_forward.1} parent=1 // pred_region
      _
    $region29: #{flexible_cnn_forward.1} parent=1 // pred_fallthru
      _
    // Predicated region
    $region30: #{flexible_cnn_forward.1} parent=1 // pred_check
      _
    $region31: #{flexible_cnn_forward.1} parent=1 // pred_check_branch
      %63 = sbr.rel (0) target = $region33
    $region32: #{flexible_cnn_forward.1} parent=1 // pred_region
      _
    $region33: #{flexible_cnn_forward.1} parent=1 // pred_fallthru
      _
    // Predicated region
    $region34: #{flexible_cnn_forward.1} parent=1 // pred_check
      _
    $region35: #{flexible_cnn_forward.1} parent=1 // pred_check_branch
      %65 = sbr.rel (0) target = $region37
    $region36: #{flexible_cnn_forward.1} parent=1 // pred_region
      _
    $region37: #{flexible_cnn_forward.1} parent=1 // pred_fallthru
      _
    // Predicated region
    $region38: #{flexible_cnn_forward.1} parent=1 // pred_check
      _
    $region39: #{flexible_cnn_forward.1} parent=1 // pred_check_branch
      %67 = sbr.rel (0) target = $region41
    $region40: #{flexible_cnn_forward.1} parent=1 // pred_region
      %68 = dma.done [#allocation3], 32768
    $region41: #{flexible_cnn_forward.1} parent=1 // pred_fallthru
      _
    // Predicated region
    $region42: #{flexible_cnn_forward.1} parent=1 // pred_check
      _
    $region43: #{flexible_cnn_forward.1} parent=1 // pred_check_branch
      %70 = sbr.rel (0) target = $region45
    $region44: #{flexible_cnn_forward.1} parent=1 // pred_region
      %71 = dma.done [#allocation5], 16384
    $region45: #{flexible_cnn_forward.1} parent=1 // pred_fallthru
      _
    // Predicated region
    $region46: #{flexible_cnn_forward.1} parent=1 // pred_check
      _
    $region47: #{flexible_cnn_forward.1} parent=1 // pred_check_branch
      %73 = sbr.rel (0) target = $region49
    $region48: #{flexible_cnn_forward.1} parent=1 // pred_region
      %74 = dma.done [#allocation5], 4096
    $region49: #{flexible_cnn_forward.1} parent=1 // pred_fallthru
      _
    %v76 = vld [vmem:[%s0] sm:$0xff]
    %v77 = vld [vmem:[%s0 + $0x8] sm:$0xff]
    %v78 = vld [vmem:[%s0 + $0x10] sm:$0xff]
    %v79 = vld [vmem:[%s0 + $0x18] sm:$0xff]
    %v80 = vld [vmem:[%s0 + $0x20] sm:$0xff]
    %v81 = vld [vmem:[%s0 + $0x28] sm:$0xff]
    %v82 = vld [vmem:[%s0 + $0x30] sm:$0xff]
    %v83 = vld [vmem:[%s0 + $0x38] sm:$0xff]
    %v84 = vmul.f32 %v76, 0.003921569
    %v85 = vmul.f32 %v77, 0.003921569
    %v86 = vmul.f32 %v78, 0.003921569
    %v87 = vmul.f32 %v79, 0.003921569
    %v88 = vmul.f32 %v80, 0.003921569
    %v89 = vmul.f32 %v81, 0.003921569
    %v90 = vmul.f32 %v82, 0.003921569
    %v91 = vmul.f32 %v83, 0.003921569
    %v100 = vcombine.low %v84, %v86
    %v101 = vcombine.high %v84, %v86
    %v102 = vcombine.low %v88, %v90
    %v103 = vcombine.high %v88, %v90
    %v105 = vunpack.c.l.s4 1983009808
    %v106 = vunpack.c.0.s8 %v105
    %v107 = vlaneseq
    %v108 = vshrl.u32 %v107, 7
    %v109 = vsub.s32 %v106, %v108
    %v110 = vrot.slane %v100, %v109
    %v112 = vunpack.c.l.s4 1983009808
    %v113 = vunpack.c.0.s8 %v112
    %v114 = vlaneseq
    %v115 = vshrl.u32 %v114, 7
    %v116 = vsub.s32 %v113, %v115
    %v117 = vrot.slane %v101, %v116
    %v119 = vunpack.c.l.s4 1983009808
    %v120 = vunpack.c.0.s8 %v119
    %v121 = vlaneseq
    %v122 = vshrl.u32 %v121, 7
    %v123 = vsub.s32 %v120, %v122
    %v124 = vrot.slane %v102, %v123
    %v126 = vunpack.c.l.s4 1983009808
    %v127 = vunpack.c.0.s8 %v126
    %v128 = vlaneseq
    %v129 = vshrl.u32 %v128, 7
    %v130 = vsub.s32 %v127, %v129
    %v131 = vrot.slane %v103, %v130
    %v132 = vcombine.low %v110, %v124
    %v133 = vcombine.high %v110, %v124
    %v134 = vcombine.low %v117, %v131
    %v135 = vcombine.high %v117, %v131
    %v136 = vcombine.low %v85, %v87
    %v137 = vcombine.high %v85, %v87
    %v138 = vcombine.low %v89, %v91
    %v139 = vcombine.high %v89, %v91
    %v141 = vunpack.c.l.s4 1983009808
    %v142 = vunpack.c.0.s8 %v141
    %v143 = vlaneseq
    %v144 = vshrl.u32 %v143, 7
    %v145 = vsub.s32 %v142, %v144
    %v146 = vrot.slane %v136, %v145
    %v148 = vunpack.c.l.s4 1983009808
    %v149 = vunpack.c.0.s8 %v148
    %v150 = vlaneseq
    %v151 = vshrl.u32 %v150, 7
    %v152 = vsub.s32 %v149, %v151
    %v153 = vrot.slane %v137, %v152
    %v155 = vunpack.c.l.s4 1983009808
    %v156 = vunpack.c.0.s8 %v155
    %v157 = vlaneseq
    %v158 = vshrl.u32 %v157, 7
    %v159 = vsub.s32 %v156, %v158
    %v160 = vrot.slane %v138, %v159
    %v162 = vunpack.c.l.s4 1983009808
    %v163 = vunpack.c.0.s8 %v162
    %v164 = vlaneseq
    %v165 = vshrl.u32 %v164, 7
    %v166 = vsub.s32 %v163, %v165
    %v167 = vrot.slane %v139, %v166
    %v168 = vcombine.low %v146, %v160
    %v169 = vcombine.high %v146, %v160
    %v170 = vcombine.low %v153, %v167
    %v171 = vcombine.high %v153, %v167
    %v180 = vpack.c.bf16 %v132, %v132
    %v181 = vpack.c.bf16 %v133, %v133
    %v182 = vpack.c.bf16 %v134, %v134
    %v183 = vpack.c.bf16 %v135, %v135
    %v184 = vpack.c.bf16 %v168, %v168
    %v185 = vpack.c.bf16 %v169, %v169
    %v186 = vpack.c.bf16 %v170, %v170
    %v187 = vpack.c.bf16 %v171, %v171
    %v188 = vld [vmem:[#allocation2] sm:$0xff]
    %v189 = vld [vmem:[#allocation2 + $0x8] sm:$0xff]
    %v190 = vld [vmem:[#allocation2 + $0x10] sm:$0xff]
    %v191 = vld [vmem:[#allocation2 + $0x18] sm:$0xff]
    %v192 = vld [vmem:[#allocation2 + $0x20] sm:$0xff]
    %v193 = vld [vmem:[#allocation2 + $0x28] sm:$0xff]
    %v194 = vld [vmem:[#allocation2 + $0x30] sm:$0xff]
    %v195 = vld [vmem:[#allocation2 + $0x38] sm:$0xff]
    %v196 = vld [vmem:[#allocation2 + $0x40] sm:$0xff]
    %v197 = vld [vmem:[#allocation2 + $0x48] sm:$0xff]
    %v198 = vld [vmem:[#allocation2 + $0x50] sm:$0xff]
    %v199 = vld [vmem:[#allocation2 + $0x58] sm:$0xff]
    %v200 = vld [vmem:[#allocation2 + $0x60] sm:$0xff]
    %v201 = vld [vmem:[#allocation2 + $0x68] sm:$0xff]
    %v202 = vld [vmem:[#allocation2 + $0x70] sm:$0xff]
    %v203 = vld [vmem:[#allocation2 + $0x78] sm:$0xff]
    %v204 = vld [vmem:[#allocation2 + $0x80] sm:$0xff]
    %v205 = vld [vmem:[#allocation2 + $0x88] sm:$0xff]
    %v206 = vld [vmem:[#allocation2 + $0x90] sm:$0xff]
    %v207 = vld [vmem:[#allocation2 + $0x98] sm:$0xff]
    %v208 = vld [vmem:[#allocation2 + $0xa0] sm:$0xff]
    %v209 = vld [vmem:[#allocation2 + $0xa8] sm:$0xff]
    %v210 = vld [vmem:[#allocation2 + $0xb0] sm:$0xff]
    %v211 = vld [vmem:[#allocation2 + $0xb8] sm:$0xff]
    %v212 = vld [vmem:[#allocation2 + $0xc0] sm:$0xff]
    %v213 = vld [vmem:[#allocation2 + $0xc8] sm:$0xff]
    %v214 = vld [vmem:[#allocation2 + $0xd0] sm:$0xff]
    %v215 = vld [vmem:[#allocation2 + $0xd8] sm:$0xff]
    %v216 = vld [vmem:[#allocation2 + $0xe0] sm:$0xff]
    %v217 = vld [vmem:[#allocation2 + $0xe8] sm:$0xff]
    %v218 = vld [vmem:[#allocation2 + $0xf0] sm:$0xff]
    %v219 = vld [vmem:[#allocation2 + $0xf8] sm:$0xff]
    %v220 = vld [vmem:[#allocation2 + $0x100] sm:$0xff]
    %v221 = vld [vmem:[#allocation2 + $0x108] sm:$0xff]
    %v222 = vld [vmem:[#allocation2 + $0x110] sm:$0xff]
    %v223 = vld [vmem:[#allocation2 + $0x118] sm:$0xff]
    %v224 = vld [vmem:[#allocation2 + $0x120] sm:$0xff]
    %v225 = vld [vmem:[#allocation2 + $0x128] sm:$0xff]
    %v226 = vld [vmem:[#allocation2 + $0x130] sm:$0xff]
    %v227 = vld [vmem:[#allocation2 + $0x138] sm:$0xff]
    %v228 = vld [vmem:[#allocation2 + $0x140] sm:$0xff]
    %v229 = vld [vmem:[#allocation2 + $0x148] sm:$0xff]
    %v230 = vld [vmem:[#allocation2 + $0x150] sm:$0xff]
    %v231 = vld [vmem:[#allocation2 + $0x158] sm:$0xff]
    %v232 = vld [vmem:[#allocation2 + $0x160] sm:$0xff]
    %v233 = vld [vmem:[#allocation2 + $0x168] sm:$0xff]
    %v234 = vld [vmem:[#allocation2 + $0x170] sm:$0xff]
    %v235 = vld [vmem:[#allocation2 + $0x178] sm:$0xff]
    %v236 = vld [vmem:[#allocation2 + $0x180] sm:$0xff]
    %v237 = vld [vmem:[#allocation2 + $0x188] sm:$0xff]
    %v238 = vld [vmem:[#allocation2 + $0x190] sm:$0xff]
    %v239 = vld [vmem:[#allocation2 + $0x198] sm:$0xff]
    %v240 = vld [vmem:[#allocation2 + $0x1a0] sm:$0xff]
    %v241 = vld [vmem:[#allocation2 + $0x1a8] sm:$0xff]
    %v242 = vld [vmem:[#allocation2 + $0x1b0] sm:$0xff]
    %v243 = vld [vmem:[#allocation2 + $0x1b8] sm:$0xff]
    %v244 = vld [vmem:[#allocation2 + $0x1c0] sm:$0xff]
    %v245 = vld [vmem:[#allocation2 + $0x1c8] sm:$0xff]
    %v246 = vld [vmem:[#allocation2 + $0x1d0] sm:$0xff]
    %v247 = vld [vmem:[#allocation2 + $0x1d8] sm:$0xff]
    %v248 = vld [vmem:[#allocation2 + $0x1e0] sm:$0xff]
    %v249 = vld [vmem:[#allocation2 + $0x1e8] sm:$0xff]
    %v250 = vld [vmem:[#allocation2 + $0x1f0] sm:$0xff]
    %v251 = vld [vmem:[#allocation2 + $0x1f8] sm:$0xff]
    %v252 = vld [vmem:[#allocation2 + $0x200] sm:$0xff]
    %v253 = vld [vmem:[#allocation2 + $0x208] sm:$0xff]
    %v254 = vld [vmem:[#allocation2 + $0x210] sm:$0xff]
    %v255 = vld [vmem:[#allocation2 + $0x218] sm:$0xff]
    %v256 = vld [vmem:[#allocation2 + $0x220] sm:$0xff]
    %v257 = vld [vmem:[#allocation2 + $0x228] sm:$0xff]
    %v258 = vld [vmem:[#allocation2 + $0x230] sm:$0xff]
    %v259 = vld [vmem:[#allocation2 + $0x238] sm:$0xff]
    %v260 = vld [vmem:[#allocation2 + $0x240] sm:$0xff]
    %v261 = vld [vmem:[#allocation2 + $0x248] sm:$0xff]
    %v262 = vld [vmem:[#allocation2 + $0x250] sm:$0xff]
    %v263 = vld [vmem:[#allocation2 + $0x258] sm:$0xff]
    %v264 = vld [vmem:[#allocation2 + $0x260] sm:$0xff]
    %v265 = vld [vmem:[#allocation2 + $0x268] sm:$0xff]
    %v266 = vld [vmem:[#allocation2 + $0x270] sm:$0xff]
    %v267 = vld [vmem:[#allocation2 + $0x278] sm:$0xff]
    %v268 = vld [vmem:[#allocation2 + $0x280] sm:$0xff]
    %v269 = vld [vmem:[#allocation2 + $0x288] sm:$0xff]
    %v270 = vld [vmem:[#allocation2 + $0x290] sm:$0xff]
    %v271 = vld [vmem:[#allocation2 + $0x298] sm:$0xff]
    %v272 = vld [vmem:[#allocation2 + $0x2a0] sm:$0xff]
    %v273 = vld [vmem:[#allocation2 + $0x2a8] sm:$0xff]
    %v274 = vld [vmem:[#allocation2 + $0x2b0] sm:$0xff]
    %v275 = vld [vmem:[#allocation2 + $0x2b8] sm:$0xff]
    %v276 = vld [vmem:[#allocation2 + $0x2c0] sm:$0xff]
    %v277 = vld [vmem:[#allocation2 + $0x2c8] sm:$0xff]
    %v278 = vld [vmem:[#allocation2 + $0x2d0] sm:$0xff]
    %v279 = vld [vmem:[#allocation2 + $0x2d8] sm:$0xff]
    %v280 = vld [vmem:[#allocation2 + $0x2e0] sm:$0xff]
    %v281 = vld [vmem:[#allocation2 + $0x2e8] sm:$0xff]
    %v282 = vld [vmem:[#allocation2 + $0x2f0] sm:$0xff]
    %v283 = vld [vmem:[#allocation2 + $0x2f8] sm:$0xff]
    %v284 = vld [vmem:[#allocation2 + $0x300] sm:$0xff]
    %v285 = vld [vmem:[#allocation2 + $0x308] sm:$0xff]
    %v286 = vld [vmem:[#allocation2 + $0x310] sm:$0xff]
    %v287 = vld [vmem:[#allocation2 + $0x318] sm:$0xff]
    %v288 = vld [vmem:[#allocation2 + $0x320] sm:$0xff]
    %v289 = vld [vmem:[#allocation2 + $0x328] sm:$0xff]
    %v290 = vld [vmem:[#allocation2 + $0x330] sm:$0xff]
    %v291 = vld [vmem:[#allocation2 + $0x338] sm:$0xff]
    %v292 = vld [vmem:[#allocation2 + $0x340] sm:$0xff]
    %v293 = vld [vmem:[#allocation2 + $0x348] sm:$0xff]
    %v294 = vld [vmem:[#allocation2 + $0x350] sm:$0xff]
    %v295 = vld [vmem:[#allocation2 + $0x358] sm:$0xff]
    %v296 = vld [vmem:[#allocation2 + $0x360] sm:$0xff]
    %v297 = vld [vmem:[#allocation2 + $0x368] sm:$0xff]
    %v298 = vld [vmem:[#allocation2 + $0x370] sm:$0xff]
    %v299 = vld [vmem:[#allocation2 + $0x378] sm:$0xff]
    %v300 = vld [vmem:[#allocation2 + $0x380] sm:$0xff]
    %v301 = vld [vmem:[#allocation2 + $0x388] sm:$0xff]
    %v302 = vld [vmem:[#allocation2 + $0x390] sm:$0xff]
    %v303 = vld [vmem:[#allocation2 + $0x398] sm:$0xff]
    %v304 = vld [vmem:[#allocation2 + $0x3a0] sm:$0xff]
    %v305 = vld [vmem:[#allocation2 + $0x3a8] sm:$0xff]
    %v306 = vld [vmem:[#allocation2 + $0x3b0] sm:$0xff]
    %v307 = vld [vmem:[#allocation2 + $0x3b8] sm:$0xff]
    %v308 = vld [vmem:[#allocation2 + $0x3c0] sm:$0xff]
    %v309 = vld [vmem:[#allocation2 + $0x3c8] sm:$0xff]
    %v310 = vld [vmem:[#allocation2 + $0x3d0] sm:$0xff]
    %v311 = vld [vmem:[#allocation2 + $0x3d8] sm:$0xff]
    %v312 = vld [vmem:[#allocation2 + $0x3e0] sm:$0xff]
    %v313 = vld [vmem:[#allocation2 + $0x3e8] sm:$0xff]
    %v314 = vld [vmem:[#allocation2 + $0x3f0] sm:$0xff]
    %v315 = vld [vmem:[#allocation2 + $0x3f8] sm:$0xff]
    %v316 = vld [vmem:[#allocation2 + $0x400] sm:$0xff]
    %v317 = vld [vmem:[#allocation2 + $0x408] sm:$0xff]
    %v318 = vld [vmem:[#allocation2 + $0x410] sm:$0xff]
    %v319 = vld [vmem:[#allocation2 + $0x418] sm:$0xff]
    %v320 = vld [vmem:[#allocation2 + $0x420] sm:$0xff]
    %v321 = vld [vmem:[#allocation2 + $0x428] sm:$0xff]
    %v322 = vld [vmem:[#allocation2 + $0x430] sm:$0xff]
    %v323 = vld [vmem:[#allocation2 + $0x438] sm:$0xff]
    %v324 = vld [vmem:[#allocation2 + $0x440] sm:$0xff]
    %v325 = vld [vmem:[#allocation2 + $0x448] sm:$0xff]
    %v326 = vld [vmem:[#allocation2 + $0x450] sm:$0xff]
    %v327 = vld [vmem:[#allocation2 + $0x458] sm:$0xff]
    %v328 = vld [vmem:[#allocation2 + $0x460] sm:$0xff]
    %v329 = vld [vmem:[#allocation2 + $0x468] sm:$0xff]
    %v330 = vld [vmem:[#allocation2 + $0x470] sm:$0xff]
    %v331 = vld [vmem:[#allocation2 + $0x478] sm:$0xff]
    %v332 = vld [vmem:[#allocation2 + $0x480] sm:$0xff]
    %v333 = vld [vmem:[#allocation2 + $0x488] sm:$0xff]
    %v334 = vld [vmem:[#allocation2 + $0x490] sm:$0xff]
    %v335 = vld [vmem:[#allocation2 + $0x498] sm:$0xff]
    %v336 = vld [vmem:[#allocation2 + $0x4a0] sm:$0xff]
    %v337 = vld [vmem:[#allocation2 + $0x4a8] sm:$0xff]
    %v338 = vld [vmem:[#allocation2 + $0x4b0] sm:$0xff]
    %v339 = vld [vmem:[#allocation2 + $0x4b8] sm:$0xff]
    %v340 = vld [vmem:[#allocation2 + $0x4c0] sm:$0xff]
    %v341 = vld [vmem:[#allocation2 + $0x4c8] sm:$0xff]
    %v342 = vld [vmem:[#allocation2 + $0x4d0] sm:$0xff]
    %v343 = vld [vmem:[#allocation2 + $0x4d8] sm:$0xff]
    %v344 = vld [vmem:[#allocation2 + $0x4e0] sm:$0xff]
    %v345 = vld [vmem:[#allocation2 + $0x4e8] sm:$0xff]
    %v346 = vld [vmem:[#allocation2 + $0x4f0] sm:$0xff]
    %v347 = vld [vmem:[#allocation2 + $0x4f8] sm:$0xff]
    %v348 = vld [vmem:[#allocation2 + $0x500] sm:$0xff]
    %v349 = vld [vmem:[#allocation2 + $0x508] sm:$0xff]
    %v350 = vld [vmem:[#allocation2 + $0x510] sm:$0xff]
    %v351 = vld [vmem:[#allocation2 + $0x518] sm:$0xff]
    %v352 = vld [vmem:[#allocation2 + $0x520] sm:$0xff]
    %v353 = vld [vmem:[#allocation2 + $0x528] sm:$0xff]
    %v354 = vld [vmem:[#allocation2 + $0x530] sm:$0xff]
    %v355 = vld [vmem:[#allocation2 + $0x538] sm:$0xff]
    %v356 = vld [vmem:[#allocation2 + $0x540] sm:$0xff]
    %v357 = vld [vmem:[#allocation2 + $0x548] sm:$0xff]
    %v358 = vld [vmem:[#allocation2 + $0x550] sm:$0xff]
    %v359 = vld [vmem:[#allocation2 + $0x558] sm:$0xff]
    %v360 = vld [vmem:[#allocation2 + $0x560] sm:$0xff]
    %v361 = vld [vmem:[#allocation2 + $0x568] sm:$0xff]
    %v362 = vld [vmem:[#allocation2 + $0x570] sm:$0xff]
    %v363 = vld [vmem:[#allocation2 + $0x578] sm:$0xff]
    %v364 = vld [vmem:[#allocation2 + $0x580] sm:$0xff]
    %v365 = vld [vmem:[#allocation2 + $0x588] sm:$0xff]
    %v366 = vld [vmem:[#allocation2 + $0x590] sm:$0xff]
    %v367 = vld [vmem:[#allocation2 + $0x598] sm:$0xff]
    %v368 = vld [vmem:[#allocation2 + $0x5a0] sm:$0xff]
    %v369 = vld [vmem:[#allocation2 + $0x5a8] sm:$0xff]
    %v370 = vld [vmem:[#allocation2 + $0x5b0] sm:$0xff]
    %v371 = vld [vmem:[#allocation2 + $0x5b8] sm:$0xff]
    %v372 = vld [vmem:[#allocation2 + $0x5c0] sm:$0xff]
    %v373 = vld [vmem:[#allocation2 + $0x5c8] sm:$0xff]
    %v374 = vld [vmem:[#allocation2 + $0x5d0] sm:$0xff]
    %v375 = vld [vmem:[#allocation2 + $0x5d8] sm:$0xff]
    %v376 = vld [vmem:[#allocation2 + $0x5e0] sm:$0xff]
    %v377 = vld [vmem:[#allocation2 + $0x5e8] sm:$0xff]
    %v378 = vld [vmem:[#allocation2 + $0x5f0] sm:$0xff]
    %v379 = vld [vmem:[#allocation2 + $0x5f8] sm:$0xff]
    %v380 = vld [vmem:[#allocation2 + $0x600] sm:$0xff]
    %v381 = vld [vmem:[#allocation2 + $0x608] sm:$0xff]
    %v382 = vld [vmem:[#allocation2 + $0x610] sm:$0xff]
    %v383 = vld [vmem:[#allocation2 + $0x618] sm:$0xff]
    %v384 = vld [vmem:[#allocation2 + $0x620] sm:$0xff]
    %v385 = vld [vmem:[#allocation2 + $0x628] sm:$0xff]
    %v386 = vld [vmem:[#allocation2 + $0x630] sm:$0xff]
    %v387 = vld [vmem:[#allocation2 + $0x638] sm:$0xff]
    %v388 = vld [vmem:[#allocation2 + $0x640] sm:$0xff]
    %v389 = vld [vmem:[#allocation2 + $0x648] sm:$0xff]
    %v390 = vld [vmem:[#allocation2 + $0x650] sm:$0xff]
    %v391 = vld [vmem:[#allocation2 + $0x658] sm:$0xff]
    %v392 = vld [vmem:[#allocation2 + $0x660] sm:$0xff]
    %v393 = vld [vmem:[#allocation2 + $0x668] sm:$0xff]
    %v394 = vld [vmem:[#allocation2 + $0x670] sm:$0xff]
    %v395 = vld [vmem:[#allocation2 + $0x678] sm:$0xff]
    %v396 = vld [vmem:[#allocation2 + $0x680] sm:$0xff]
    %v397 = vld [vmem:[#allocation2 + $0x688] sm:$0xff]
    %v398 = vld [vmem:[#allocation2 + $0x690] sm:$0xff]
    %v399 = vld [vmem:[#allocation2 + $0x698] sm:$0xff]
    %v400 = vld [vmem:[#allocation2 + $0x6a0] sm:$0xff]
    %v401 = vld [vmem:[#allocation2 + $0x6a8] sm:$0xff]
    %v402 = vld [vmem:[#allocation2 + $0x6b0] sm:$0xff]
    %v403 = vld [vmem:[#allocation2 + $0x6b8] sm:$0xff]
    %v404 = vld [vmem:[#allocation2 + $0x6c0] sm:$0xff]
    %v405 = vld [vmem:[#allocation2 + $0x6c8] sm:$0xff]
    %v406 = vld [vmem:[#allocation2 + $0x6d0] sm:$0xff]
    %v407 = vld [vmem:[#allocation2 + $0x6d8] sm:$0xff]
    %v408 = vld [vmem:[#allocation2 + $0x6e0] sm:$0xff]
    %v409 = vld [vmem:[#allocation2 + $0x6e8] sm:$0xff]
    %v410 = vld [vmem:[#allocation2 + $0x6f0] sm:$0xff]
    %v411 = vld [vmem:[#allocation2 + $0x6f8] sm:$0xff]
    %v412 = vld [vmem:[#allocation2 + $0x700] sm:$0xff]
    %v413 = vld [vmem:[#allocation2 + $0x708] sm:$0xff]
    %v414 = vld [vmem:[#allocation2 + $0x710] sm:$0xff]
    %v415 = vld [vmem:[#allocation2 + $0x718] sm:$0xff]
    %v416 = vld [vmem:[#allocation2 + $0x720] sm:$0xff]
    %v417 = vld [vmem:[#allocation2 + $0x728] sm:$0xff]
    %v418 = vld [vmem:[#allocation2 + $0x730] sm:$0xff]
    %v419 = vld [vmem:[#allocation2 + $0x738] sm:$0xff]
    %v420 = vld [vmem:[#allocation2 + $0x740] sm:$0xff]
    %v421 = vld [vmem:[#allocation2 + $0x748] sm:$0xff]
    %v422 = vld [vmem:[#allocation2 + $0x750] sm:$0xff]
    %v423 = vld [vmem:[#allocation2 + $0x758] sm:$0xff]
    %v424 = vld [vmem:[#allocation2 + $0x760] sm:$0xff]
    %v425 = vld [vmem:[#allocation2 + $0x768] sm:$0xff]
    %v426 = vld [vmem:[#allocation2 + $0x770] sm:$0xff]
    %v427 = vld [vmem:[#allocation2 + $0x778] sm:$0xff]
    %v428 = vld [vmem:[#allocation2 + $0x780] sm:$0xff]
    %v429 = vld [vmem:[#allocation2 + $0x788] sm:$0xff]
    %v430 = vld [vmem:[#allocation2 + $0x790] sm:$0xff]
    %v431 = vld [vmem:[#allocation2 + $0x798] sm:$0xff]
    %v432 = vld [vmem:[#allocation2 + $0x7a0] sm:$0xff]
    %v433 = vld [vmem:[#allocation2 + $0x7a8] sm:$0xff]
    %v434 = vld [vmem:[#allocation2 + $0x7b0] sm:$0xff]
    %v435 = vld [vmem:[#allocation2 + $0x7b8] sm:$0xff]
    %v436 = vld [vmem:[#allocation2 + $0x7c0] sm:$0xff]
    %v437 = vld [vmem:[#allocation2 + $0x7c8] sm:$0xff]
    %v438 = vld [vmem:[#allocation2 + $0x7d0] sm:$0xff]
    %v439 = vld [vmem:[#allocation2 + $0x7d8] sm:$0xff]
    %v440 = vld [vmem:[#allocation2 + $0x7e0] sm:$0xff]
    %v441 = vld [vmem:[#allocation2 + $0x7e8] sm:$0xff]
    %v442 = vld [vmem:[#allocation2 + $0x7f0] sm:$0xff]
    %v443 = vld [vmem:[#allocation2 + $0x7f8] sm:$0xff]
    %v444 = vld [vmem:[%s2] sm:$0xf]
    %v446 = vlaneseq
    %v447 = vshrl.u32 %v446, 7
    %v448 = vsub.s32 0, %v447
    %v449 = vrot.slane %v444, %v448
    %v450 = vlaneseq
    %v451 = vshrl.u32 %v450, 7
    %v452 = vsub.s32 1, %v451
    %v453 = vrot.slane %v444, %v452
    %v454 = vlaneseq
    %v455 = vshrl.u32 %v454, 7
    %v456 = vsub.s32 2, %v455
    %v457 = vrot.slane %v444, %v456
    %v458 = vlaneseq
    %v459 = vshrl.u32 %v458, 7
    %v460 = vsub.s32 3, %v459
    %v461 = vrot.slane %v444, %v460
    %v722 = vunpack.c.l.b16 %v188
    %v723 = vunpack.c.h.b16 %v188
    %v724 = vunpack.c.l.b16 %v189
    %v725 = vunpack.c.h.b16 %v189
    %v726 = vunpack.c.l.b16 %v190
    %v727 = vunpack.c.h.b16 %v190
    %v728 = vunpack.c.l.b16 %v191
    %v729 = vunpack.c.h.b16 %v191
    %v730 = vunpack.c.l.b16 %v192
    %v731 = vunpack.c.h.b16 %v192
    %v732 = vunpack.c.l.b16 %v193
    %v733 = vunpack.c.h.b16 %v193
    %v734 = vunpack.c.l.b16 %v194
    %v735 = vunpack.c.h.b16 %v194
    %v736 = vunpack.c.l.b16 %v195
    %v737 = vunpack.c.h.b16 %v195
    %v738 = vunpack.c.l.b16 %v196
    %v739 = vunpack.c.h.b16 %v196
    %v740 = vunpack.c.l.b16 %v197
    %v741 = vunpack.c.h.b16 %v197
    %v742 = vunpack.c.l.b16 %v198
    %v743 = vunpack.c.h.b16 %v198
    %v744 = vunpack.c.l.b16 %v199
    %v745 = vunpack.c.h.b16 %v199
    %v746 = vunpack.c.l.b16 %v200
    %v747 = vunpack.c.h.b16 %v200
    %v748 = vunpack.c.l.b16 %v201
    %v749 = vunpack.c.h.b16 %v201
    %v750 = vunpack.c.l.b16 %v202
    %v751 = vunpack.c.h.b16 %v202
    %v752 = vunpack.c.l.b16 %v203
    %v753 = vunpack.c.h.b16 %v203
    %v754 = vunpack.c.l.b16 %v204
    %v755 = vunpack.c.h.b16 %v204
    %v756 = vunpack.c.l.b16 %v205
    %v757 = vunpack.c.h.b16 %v205
    %v758 = vunpack.c.l.b16 %v206
    %v759 = vunpack.c.h.b16 %v206
    %v760 = vunpack.c.l.b16 %v207
    %v761 = vunpack.c.h.b16 %v207
    %v762 = vunpack.c.l.b16 %v208
    %v763 = vunpack.c.h.b16 %v208
    %v764 = vunpack.c.l.b16 %v209
    %v765 = vunpack.c.h.b16 %v209
    %v766 = vunpack.c.l.b16 %v210
    %v767 = vunpack.c.h.b16 %v210
    %v768 = vunpack.c.l.b16 %v211
    %v769 = vunpack.c.h.b16 %v211
    %v770 = vunpack.c.l.b16 %v212
    %v771 = vunpack.c.h.b16 %v212
    %v772 = vunpack.c.l.b16 %v213
    %v773 = vunpack.c.h.b16 %v213
    %v774 = vunpack.c.l.b16 %v214
    %v775 = vunpack.c.h.b16 %v214
    %v776 = vunpack.c.l.b16 %v215
    %v777 = vunpack.c.h.b16 %v215
    %v778 = vunpack.c.l.b16 %v216
    %v779 = vunpack.c.h.b16 %v216
    %v780 = vunpack.c.l.b16 %v217
    %v781 = vunpack.c.h.b16 %v217
    %v782 = vunpack.c.l.b16 %v218
    %v783 = vunpack.c.h.b16 %v218
    %v784 = vunpack.c.l.b16 %v219
    %v785 = vunpack.c.h.b16 %v219
    %v786 = vunpack.c.l.b16 %v220
    %v787 = vunpack.c.h.b16 %v220
    %v788 = vunpack.c.l.b16 %v221
    %v789 = vunpack.c.h.b16 %v221
    %v790 = vunpack.c.l.b16 %v222
    %v791 = vunpack.c.h.b16 %v222
    %v792 = vunpack.c.l.b16 %v223
    %v793 = vunpack.c.h.b16 %v223
    %v794 = vunpack.c.l.b16 %v224
    %v795 = vunpack.c.h.b16 %v224
    %v796 = vunpack.c.l.b16 %v225
    %v797 = vunpack.c.h.b16 %v225
    %v798 = vunpack.c.l.b16 %v226
    %v799 = vunpack.c.h.b16 %v226
    %v800 = vunpack.c.l.b16 %v227
    %v801 = vunpack.c.h.b16 %v227
    %v802 = vunpack.c.l.b16 %v228
    %v803 = vunpack.c.h.b16 %v228
    %v804 = vunpack.c.l.b16 %v229
    %v805 = vunpack.c.h.b16 %v229
    %v806 = vunpack.c.l.b16 %v230
    %v807 = vunpack.c.h.b16 %v230
    %v808 = vunpack.c.l.b16 %v231
    %v809 = vunpack.c.h.b16 %v231
    %v810 = vunpack.c.l.b16 %v232
    %v811 = vunpack.c.h.b16 %v232
    %v812 = vunpack.c.l.b16 %v233
    %v813 = vunpack.c.h.b16 %v233
    %v814 = vunpack.c.l.b16 %v234
    %v815 = vunpack.c.h.b16 %v234
    %v816 = vunpack.c.l.b16 %v235
    %v817 = vunpack.c.h.b16 %v235
    %v818 = vunpack.c.l.b16 %v236
    %v819 = vunpack.c.h.b16 %v236
    %v820 = vunpack.c.l.b16 %v237
    %v821 = vunpack.c.h.b16 %v237
    %v822 = vunpack.c.l.b16 %v238
    %v823 = vunpack.c.h.b16 %v238
    %v824 = vunpack.c.l.b16 %v239
    %v825 = vunpack.c.h.b16 %v239
    %v826 = vunpack.c.l.b16 %v240
    %v827 = vunpack.c.h.b16 %v240
    %v828 = vunpack.c.l.b16 %v241
    %v829 = vunpack.c.h.b16 %v241
    %v830 = vunpack.c.l.b16 %v242
    %v831 = vunpack.c.h.b16 %v242
    %v832 = vunpack.c.l.b16 %v243
    %v833 = vunpack.c.h.b16 %v243
    %v834 = vunpack.c.l.b16 %v244
    %v835 = vunpack.c.h.b16 %v244
    %v836 = vunpack.c.l.b16 %v245
    %v837 = vunpack.c.h.b16 %v245
    %v838 = vunpack.c.l.b16 %v246
    %v839 = vunpack.c.h.b16 %v246
    %v840 = vunpack.c.l.b16 %v247
    %v841 = vunpack.c.h.b16 %v247
    %v842 = vunpack.c.l.b16 %v248
    %v843 = vunpack.c.h.b16 %v248
    %v844 = vunpack.c.l.b16 %v249
    %v845 = vunpack.c.h.b16 %v249
    %v846 = vunpack.c.l.b16 %v250
    %v847 = vunpack.c.h.b16 %v250
    %v848 = vunpack.c.l.b16 %v251
    %v849 = vunpack.c.h.b16 %v251
    %v850 = vunpack.c.l.b16 %v252
    %v851 = vunpack.c.h.b16 %v252
    %v852 = vunpack.c.l.b16 %v253
    %v853 = vunpack.c.h.b16 %v253
    %v854 = vunpack.c.l.b16 %v254
    %v855 = vunpack.c.h.b16 %v254
    %v856 = vunpack.c.l.b16 %v255
    %v857 = vunpack.c.h.b16 %v255
    %v858 = vunpack.c.l.b16 %v256
    %v859 = vunpack.c.h.b16 %v256
    %v860 = vunpack.c.l.b16 %v257
    %v861 = vunpack.c.h.b16 %v257
    %v862 = vunpack.c.l.b16 %v258
    %v863 = vunpack.c.h.b16 %v258
    %v864 = vunpack.c.l.b16 %v259
    %v865 = vunpack.c.h.b16 %v259
    %v866 = vunpack.c.l.b16 %v260
    %v867 = vunpack.c.h.b16 %v260
    %v868 = vunpack.c.l.b16 %v261
    %v869 = vunpack.c.h.b16 %v261
    %v870 = vunpack.c.l.b16 %v262
    %v871 = vunpack.c.h.b16 %v262
    %v872 = vunpack.c.l.b16 %v263
    %v873 = vunpack.c.h.b16 %v263
    %v874 = vunpack.c.l.b16 %v264
    %v875 = vunpack.c.h.b16 %v264
    %v876 = vunpack.c.l.b16 %v265
    %v877 = vunpack.c.h.b16 %v265
    %v878 = vunpack.c.l.b16 %v266
    %v879 = vunpack.c.h.b16 %v266
    %v880 = vunpack.c.l.b16 %v267
    %v881 = vunpack.c.h.b16 %v267
    %v882 = vunpack.c.l.b16 %v268
    %v883 = vunpack.c.h.b16 %v268
    %v884 = vunpack.c.l.b16 %v269
    %v885 = vunpack.c.h.b16 %v269
    %v886 = vunpack.c.l.b16 %v270
    %v887 = vunpack.c.h.b16 %v270
    %v888 = vunpack.c.l.b16 %v271
    %v889 = vunpack.c.h.b16 %v271
    %v890 = vunpack.c.l.b16 %v272
    %v891 = vunpack.c.h.b16 %v272
    %v892 = vunpack.c.l.b16 %v273
    %v893 = vunpack.c.h.b16 %v273
    %v894 = vunpack.c.l.b16 %v274
    %v895 = vunpack.c.h.b16 %v274
    %v896 = vunpack.c.l.b16 %v275
    %v897 = vunpack.c.h.b16 %v275
    %v898 = vunpack.c.l.b16 %v276
    %v899 = vunpack.c.h.b16 %v276
    %v900 = vunpack.c.l.b16 %v277
    %v901 = vunpack.c.h.b16 %v277
    %v902 = vunpack.c.l.b16 %v278
    %v903 = vunpack.c.h.b16 %v278
    %v904 = vunpack.c.l.b16 %v279
    %v905 = vunpack.c.h.b16 %v279
    %v906 = vunpack.c.l.b16 %v280
    %v907 = vunpack.c.h.b16 %v280
    %v908 = vunpack.c.l.b16 %v281
    %v909 = vunpack.c.h.b16 %v281
    %v910 = vunpack.c.l.b16 %v282
    %v911 = vunpack.c.h.b16 %v282
    %v912 = vunpack.c.l.b16 %v283
    %v913 = vunpack.c.h.b16 %v283
    %v914 = vunpack.c.l.b16 %v284
    %v915 = vunpack.c.h.b16 %v284
    %v916 = vunpack.c.l.b16 %v285
    %v917 = vunpack.c.h.b16 %v285
    %v918 = vunpack.c.l.b16 %v286
    %v919 = vunpack.c.h.b16 %v286
    %v920 = vunpack.c.l.b16 %v287
    %v921 = vunpack.c.h.b16 %v287
    %v922 = vunpack.c.l.b16 %v288
    %v923 = vunpack.c.h.b16 %v288
    %v924 = vunpack.c.l.b16 %v289
    %v925 = vunpack.c.h.b16 %v289
    %v926 = vunpack.c.l.b16 %v290
    %v927 = vunpack.c.h.b16 %v290
    %v928 = vunpack.c.l.b16 %v291
    %v929 = vunpack.c.h.b16 %v291
    %v930 = vunpack.c.l.b16 %v292
    %v931 = vunpack.c.h.b16 %v292
    %v932 = vunpack.c.l.b16 %v293
    %v933 = vunpack.c.h.b16 %v293
    %v934 = vunpack.c.l.b16 %v294
    %v935 = vunpack.c.h.b16 %v294
    %v936 = vunpack.c.l.b16 %v295
    %v937 = vunpack.c.h.b16 %v295
    %v938 = vunpack.c.l.b16 %v296
    %v939 = vunpack.c.h.b16 %v296
    %v940 = vunpack.c.l.b16 %v297
    %v941 = vunpack.c.h.b16 %v297
    %v942 = vunpack.c.l.b16 %v298
    %v943 = vunpack.c.h.b16 %v298
    %v944 = vunpack.c.l.b16 %v299
    %v945 = vunpack.c.h.b16 %v299
    %v946 = vunpack.c.l.b16 %v300
    %v947 = vunpack.c.h.b16 %v300
    %v948 = vunpack.c.l.b16 %v301
    %v949 = vunpack.c.h.b16 %v301
    %v950 = vunpack.c.l.b16 %v302
    %v951 = vunpack.c.h.b16 %v302
    %v952 = vunpack.c.l.b16 %v303
    %v953 = vunpack.c.h.b16 %v303
    %v954 = vunpack.c.l.b16 %v304
    %v955 = vunpack.c.h.b16 %v304
    %v956 = vunpack.c.l.b16 %v305
    %v957 = vunpack.c.h.b16 %v305
    %v958 = vunpack.c.l.b16 %v306
    %v959 = vunpack.c.h.b16 %v306
    %v960 = vunpack.c.l.b16 %v307
    %v961 = vunpack.c.h.b16 %v307
    %v962 = vunpack.c.l.b16 %v308
    %v963 = vunpack.c.h.b16 %v308
    %v964 = vunpack.c.l.b16 %v309
    %v965 = vunpack.c.h.b16 %v309
    %v966 = vunpack.c.l.b16 %v310
    %v967 = vunpack.c.h.b16 %v310
    %v968 = vunpack.c.l.b16 %v311
    %v969 = vunpack.c.h.b16 %v311
    %v970 = vunpack.c.l.b16 %v312
    %v971 = vunpack.c.h.b16 %v312
    %v972 = vunpack.c.l.b16 %v313
    %v973 = vunpack.c.h.b16 %v313
    %v974 = vunpack.c.l.b16 %v314
    %v975 = vunpack.c.h.b16 %v314
    %v976 = vunpack.c.l.b16 %v315
    %v977 = vunpack.c.h.b16 %v315
    %v978 = vunpack.c.l.b16 %v316
    %v979 = vunpack.c.h.b16 %v316
    %v980 = vunpack.c.l.b16 %v317
    %v981 = vunpack.c.h.b16 %v317
    %v982 = vunpack.c.l.b16 %v318
    %v983 = vunpack.c.h.b16 %v318
    %v984 = vunpack.c.l.b16 %v319
    %v985 = vunpack.c.h.b16 %v319
    %v986 = vunpack.c.l.b16 %v320
    %v987 = vunpack.c.h.b16 %v320
    %v988 = vunpack.c.l.b16 %v321
    %v989 = vunpack.c.h.b16 %v321
    %v990 = vunpack.c.l.b16 %v322
    %v991 = vunpack.c.h.b16 %v322
    %v992 = vunpack.c.l.b16 %v323
    %v993 = vunpack.c.h.b16 %v323
    %v994 = vunpack.c.l.b16 %v324
    %v995 = vunpack.c.h.b16 %v324
    %v996 = vunpack.c.l.b16 %v325
    %v997 = vunpack.c.h.b16 %v325
    %v998 = vunpack.c.l.b16 %v326
    %v999 = vunpack.c.h.b16 %v326
    %v1000 = vunpack.c.l.b16 %v327
    %v1001 = vunpack.c.h.b16 %v327
    %v1002 = vunpack.c.l.b16 %v328
    %v1003 = vunpack.c.h.b16 %v328
    %v1004 = vunpack.c.l.b16 %v329
    %v1005 = vunpack.c.h.b16 %v329
    %v1006 = vunpack.c.l.b16 %v330
    %v1007 = vunpack.c.h.b16 %v330
    %v1008 = vunpack.c.l.b16 %v331
    %v1009 = vunpack.c.h.b16 %v331
    %v1010 = vunpack.c.l.b16 %v332
    %v1011 = vunpack.c.h.b16 %v332
    %v1012 = vunpack.c.l.b16 %v333
    %v1013 = vunpack.c.h.b16 %v333
    %v1014 = vunpack.c.l.b16 %v334
    %v1015 = vunpack.c.h.b16 %v334
    %v1016 = vunpack.c.l.b16 %v335
    %v1017 = vunpack.c.h.b16 %v335
    %v1018 = vunpack.c.l.b16 %v336
    %v1019 = vunpack.c.h.b16 %v336
    %v1020 = vunpack.c.l.b16 %v337
    %v1021 = vunpack.c.h.b16 %v337
    %v1022 = vunpack.c.l.b16 %v338
    %v1023 = vunpack.c.h.b16 %v338
    %v1024 = vunpack.c.l.b16 %v339
    %v1025 = vunpack.c.h.b16 %v339
    %v1026 = vunpack.c.l.b16 %v340
    %v1027 = vunpack.c.h.b16 %v340
    %v1028 = vunpack.c.l.b16 %v341
    %v1029 = vunpack.c.h.b16 %v341
    %v1030 = vunpack.c.l.b16 %v342
    %v1031 = vunpack.c.h.b16 %v342
    %v1032 = vunpack.c.l.b16 %v343
    %v1033 = vunpack.c.h.b16 %v343
    %v1034 = vunpack.c.l.b16 %v344
    %v1035 = vunpack.c.h.b16 %v344
    %v1036 = vunpack.c.l.b16 %v345
    %v1037 = vunpack.c.h.b16 %v345
    %v1038 = vunpack.c.l.b16 %v346
    %v1039 = vunpack.c.h.b16 %v346
    %v1040 = vunpack.c.l.b16 %v347
    %v1041 = vunpack.c.h.b16 %v347
    %v1042 = vunpack.c.l.b16 %v348
    %v1043 = vunpack.c.h.b16 %v348
    %v1044 = vunpack.c.l.b16 %v349
    %v1045 = vunpack.c.h.b16 %v349
    %v1046 = vunpack.c.l.b16 %v350
    %v1047 = vunpack.c.h.b16 %v350
    %v1048 = vunpack.c.l.b16 %v351
    %v1049 = vunpack.c.h.b16 %v351
    %v1050 = vunpack.c.l.b16 %v352
    %v1051 = vunpack.c.h.b16 %v352
    %v1052 = vunpack.c.l.b16 %v353
    %v1053 = vunpack.c.h.b16 %v353
    %v1054 = vunpack.c.l.b16 %v354
    %v1055 = vunpack.c.h.b16 %v354
    %v1056 = vunpack.c.l.b16 %v355
    %v1057 = vunpack.c.h.b16 %v355
    %v1058 = vunpack.c.l.b16 %v356
    %v1059 = vunpack.c.h.b16 %v356
    %v1060 = vunpack.c.l.b16 %v357
    %v1061 = vunpack.c.h.b16 %v357
    %v1062 = vunpack.c.l.b16 %v358
    %v1063 = vunpack.c.h.b16 %v358
    %v1064 = vunpack.c.l.b16 %v359
    %v1065 = vunpack.c.h.b16 %v359
    %v1066 = vunpack.c.l.b16 %v360
    %v1067 = vunpack.c.h.b16 %v360
    %v1068 = vunpack.c.l.b16 %v361
    %v1069 = vunpack.c.h.b16 %v361
    %v1070 = vunpack.c.l.b16 %v362
    %v1071 = vunpack.c.h.b16 %v362
    %v1072 = vunpack.c.l.b16 %v363
    %v1073 = vunpack.c.h.b16 %v363
    %v1074 = vunpack.c.l.b16 %v364
    %v1075 = vunpack.c.h.b16 %v364
    %v1076 = vunpack.c.l.b16 %v365
    %v1077 = vunpack.c.h.b16 %v365
    %v1078 = vunpack.c.l.b16 %v366
    %v1079 = vunpack.c.h.b16 %v366
    %v1080 = vunpack.c.l.b16 %v367
    %v1081 = vunpack.c.h.b16 %v367
    %v1082 = vunpack.c.l.b16 %v368
    %v1083 = vunpack.c.h.b16 %v368
    %v1084 = vunpack.c.l.b16 %v369
    %v1085 = vunpack.c.h.b16 %v369
    %v1086 = vunpack.c.l.b16 %v370
    %v1087 = vunpack.c.h.b16 %v370
    %v1088 = vunpack.c.l.b16 %v371
    %v1089 = vunpack.c.h.b16 %v371
    %v1090 = vunpack.c.l.b16 %v372
    %v1091 = vunpack.c.h.b16 %v372
    %v1092 = vunpack.c.l.b16 %v373
    %v1093 = vunpack.c.h.b16 %v373
    %v1094 = vunpack.c.l.b16 %v374
    %v1095 = vunpack.c.h.b16 %v374
    %v1096 = vunpack.c.l.b16 %v375
    %v1097 = vunpack.c.h.b16 %v375
    %v1098 = vunpack.c.l.b16 %v376
    %v1099 = vunpack.c.h.b16 %v376
    %v1100 = vunpack.c.l.b16 %v377
    %v1101 = vunpack.c.h.b16 %v377
    %v1102 = vunpack.c.l.b16 %v378
    %v1103 = vunpack.c.h.b16 %v378
    %v1104 = vunpack.c.l.b16 %v379
    %v1105 = vunpack.c.h.b16 %v379
    %v1106 = vunpack.c.l.b16 %v380
    %v1107 = vunpack.c.h.b16 %v380
    %v1108 = vunpack.c.l.b16 %v381
    %v1109 = vunpack.c.h.b16 %v381
    %v1110 = vunpack.c.l.b16 %v382
    %v1111 = vunpack.c.h.b16 %v382
    %v1112 = vunpack.c.l.b16 %v383
    %v1113 = vunpack.c.h.b16 %v383
    %v1114 = vunpack.c.l.b16 %v384
    %v1115 = vunpack.c.h.b16 %v384
    %v1116 = vunpack.c.l.b16 %v385
    %v1117 = vunpack.c.h.b16 %v385
    %v1118 = vunpack.c.l.b16 %v386
    %v1119 = vunpack.c.h.b16 %v386
    %v1120 = vunpack.c.l.b16 %v387
    %v1121 = vunpack.c.h.b16 %v387
    %v1122 = vunpack.c.l.b16 %v388
    %v1123 = vunpack.c.h.b16 %v388
    %v1124 = vunpack.c.l.b16 %v389
    %v1125 = vunpack.c.h.b16 %v389
    %v1126 = vunpack.c.l.b16 %v390
    %v1127 = vunpack.c.h.b16 %v390
    %v1128 = vunpack.c.l.b16 %v391
    %v1129 = vunpack.c.h.b16 %v391
    %v1130 = vunpack.c.l.b16 %v392
    %v1131 = vunpack.c.h.b16 %v392
    %v1132 = vunpack.c.l.b16 %v393
    %v1133 = vunpack.c.h.b16 %v393
    %v1134 = vunpack.c.l.b16 %v394
    %v1135 = vunpack.c.h.b16 %v394
    %v1136 = vunpack.c.l.b16 %v395
    %v1137 = vunpack.c.h.b16 %v395
    %v1138 = vunpack.c.l.b16 %v396
    %v1139 = vunpack.c.h.b16 %v396
    %v1140 = vunpack.c.l.b16 %v397
    %v1141 = vunpack.c.h.b16 %v397
    %v1142 = vunpack.c.l.b16 %v398
    %v1143 = vunpack.c.h.b16 %v398
    %v1144 = vunpack.c.l.b16 %v399
    %v1145 = vunpack.c.h.b16 %v399
    %v1146 = vunpack.c.l.b16 %v400
    %v1147 = vunpack.c.h.b16 %v400
    %v1148 = vunpack.c.l.b16 %v401
    %v1149 = vunpack.c.h.b16 %v401
    %v1150 = vunpack.c.l.b16 %v402
    %v1151 = vunpack.c.h.b16 %v402
    %v1152 = vunpack.c.l.b16 %v403
    %v1153 = vunpack.c.h.b16 %v403
    %v1154 = vunpack.c.l.b16 %v404
    %v1155 = vunpack.c.h.b16 %v404
    %v1156 = vunpack.c.l.b16 %v405
    %v1157 = vunpack.c.h.b16 %v405
    %v1158 = vunpack.c.l.b16 %v406
    %v1159 = vunpack.c.h.b16 %v406
    %v1160 = vunpack.c.l.b16 %v407
    %v1161 = vunpack.c.h.b16 %v407
    %v1162 = vunpack.c.l.b16 %v408
    %v1163 = vunpack.c.h.b16 %v408
    %v1164 = vunpack.c.l.b16 %v409
    %v1165 = vunpack.c.h.b16 %v409
    %v1166 = vunpack.c.l.b16 %v410
    %v1167 = vunpack.c.h.b16 %v410
    %v1168 = vunpack.c.l.b16 %v411
    %v1169 = vunpack.c.h.b16 %v411
    %v1170 = vunpack.c.l.b16 %v412
    %v1171 = vunpack.c.h.b16 %v412
    %v1172 = vunpack.c.l.b16 %v413
    %v1173 = vunpack.c.h.b16 %v413
    %v1174 = vunpack.c.l.b16 %v414
    %v1175 = vunpack.c.h.b16 %v414
    %v1176 = vunpack.c.l.b16 %v415
    %v1177 = vunpack.c.h.b16 %v415
    %v1178 = vunpack.c.l.b16 %v416
    %v1179 = vunpack.c.h.b16 %v416
    %v1180 = vunpack.c.l.b16 %v417
    %v1181 = vunpack.c.h.b16 %v417
    %v1182 = vunpack.c.l.b16 %v418
    %v1183 = vunpack.c.h.b16 %v418
    %v1184 = vunpack.c.l.b16 %v419
    %v1185 = vunpack.c.h.b16 %v419
    %v1186 = vunpack.c.l.b16 %v420
    %v1187 = vunpack.c.h.b16 %v420
    %v1188 = vunpack.c.l.b16 %v421
    %v1189 = vunpack.c.h.b16 %v421
    %v1190 = vunpack.c.l.b16 %v422
    %v1191 = vunpack.c.h.b16 %v422
    %v1192 = vunpack.c.l.b16 %v423
    %v1193 = vunpack.c.h.b16 %v423
    %v1194 = vunpack.c.l.b16 %v424
    %v1195 = vunpack.c.h.b16 %v424
    %v1196 = vunpack.c.l.b16 %v425
    %v1197 = vunpack.c.h.b16 %v425
    %v1198 = vunpack.c.l.b16 %v426
    %v1199 = vunpack.c.h.b16 %v426
    %v1200 = vunpack.c.l.b16 %v427
    %v1201 = vunpack.c.h.b16 %v427
    %v1202 = vunpack.c.l.b16 %v428
    %v1203 = vunpack.c.h.b16 %v428
    %v1204 = vunpack.c.l.b16 %v429
    %v1205 = vunpack.c.h.b16 %v429
    %v1206 = vunpack.c.l.b16 %v430
    %v1207 = vunpack.c.h.b16 %v430
    %v1208 = vunpack.c.l.b16 %v431
    %v1209 = vunpack.c.h.b16 %v431
    %v1210 = vunpack.c.l.b16 %v432
    %v1211 = vunpack.c.h.b16 %v432
    %v1212 = vunpack.c.l.b16 %v433
    %v1213 = vunpack.c.h.b16 %v433
    %v1214 = vunpack.c.l.b16 %v434
    %v1215 = vunpack.c.h.b16 %v434
    %v1216 = vunpack.c.l.b16 %v435
    %v1217 = vunpack.c.h.b16 %v435
    %v1218 = vunpack.c.l.b16 %v436
    %v1219 = vunpack.c.h.b16 %v436
    %v1220 = vunpack.c.l.b16 %v437
    %v1221 = vunpack.c.h.b16 %v437
    %v1222 = vunpack.c.l.b16 %v438
    %v1223 = vunpack.c.h.b16 %v438
    %v1224 = vunpack.c.l.b16 %v439
    %v1225 = vunpack.c.h.b16 %v439
    %v1226 = vunpack.c.l.b16 %v440
    %v1227 = vunpack.c.h.b16 %v440
    %v1228 = vunpack.c.l.b16 %v441
    %v1229 = vunpack.c.h.b16 %v441
    %v1230 = vunpack.c.l.b16 %v442
    %v1231 = vunpack.c.h.b16 %v442
    %v1232 = vunpack.c.l.b16 %v443
    %v1233 = vunpack.c.h.b16 %v443
    %v1234 = vpack.c.b16 %v726, %v722
    %v1235 = vpack.c.b16 %v727, %v723
    %v1236 = vpack.c.b16 %v728, %v724
    %v1237 = vpack.c.b16 %v729, %v725
    %v1238 = vpack.c.b16 %v734, %v730
    %v1239 = vpack.c.b16 %v735, %v731
    %v1240 = vpack.c.b16 %v736, %v732
    %v1241 = vpack.c.b16 %v737, %v733
    %v1242 = vpack.c.b16 %v742, %v738
    %v1243 = vpack.c.b16 %v743, %v739
    %v1244 = vpack.c.b16 %v744, %v740
    %v1245 = vpack.c.b16 %v745, %v741
    %v1246 = vpack.c.b16 %v750, %v746
    %v1247 = vpack.c.b16 %v751, %v747
    %v1248 = vpack.c.b16 %v752, %v748
    %v1249 = vpack.c.b16 %v753, %v749
    %v1250 = vpack.c.b16 %v758, %v754
    %v1251 = vpack.c.b16 %v759, %v755
    %v1252 = vpack.c.b16 %v760, %v756
    %v1253 = vpack.c.b16 %v761, %v757
    %v1254 = vpack.c.b16 %v766, %v762
    %v1255 = vpack.c.b16 %v767, %v763
    %v1256 = vpack.c.b16 %v768, %v764
    %v1257 = vpack.c.b16 %v769, %v765
    %v1258 = vpack.c.b16 %v774, %v770
    %v1259 = vpack.c.b16 %v775, %v771
    %v1260 = vpack.c.b16 %v776, %v772
    %v1261 = vpack.c.b16 %v777, %v773
    %v1262 = vpack.c.b16 %v782, %v778
    %v1263 = vpack.c.b16 %v783, %v779
    %v1264 = vpack.c.b16 %v784, %v780
    %v1265 = vpack.c.b16 %v785, %v781
    %v1266 = vpack.c.b16 %v790, %v786
    %v1267 = vpack.c.b16 %v791, %v787
    %v1268 = vpack.c.b16 %v792, %v788
    %v1269 = vpack.c.b16 %v793, %v789
    %v1270 = vpack.c.b16 %v798, %v794
    %v1271 = vpack.c.b16 %v799, %v795
    %v1272 = vpack.c.b16 %v800, %v796
    %v1273 = vpack.c.b16 %v801, %v797
    %v1274 = vpack.c.b16 %v806, %v802
    %v1275 = vpack.c.b16 %v807, %v803
    %v1276 = vpack.c.b16 %v808, %v804
    %v1277 = vpack.c.b16 %v809, %v805
    %v1278 = vpack.c.b16 %v814, %v810
    %v1279 = vpack.c.b16 %v815, %v811
    %v1280 = vpack.c.b16 %v816, %v812
    %v1281 = vpack.c.b16 %v817, %v813
    %v1282 = vpack.c.b16 %v822, %v818
    %v1283 = vpack.c.b16 %v823, %v819
    %v1284 = vpack.c.b16 %v824, %v820
    %v1285 = vpack.c.b16 %v825, %v821
    %v1286 = vpack.c.b16 %v830, %v826
    %v1287 = vpack.c.b16 %v831, %v827
    %v1288 = vpack.c.b16 %v832, %v828
    %v1289 = vpack.c.b16 %v833, %v829
    %v1290 = vpack.c.b16 %v838, %v834
    %v1291 = vpack.c.b16 %v839, %v835
    %v1292 = vpack.c.b16 %v840, %v836
    %v1293 = vpack.c.b16 %v841, %v837
    %v1294 = vpack.c.b16 %v846, %v842
    %v1295 = vpack.c.b16 %v847, %v843
    %v1296 = vpack.c.b16 %v848, %v844
    %v1297 = vpack.c.b16 %v849, %v845
    %v1298 = vpack.c.b16 %v854, %v850
    %v1299 = vpack.c.b16 %v855, %v851
    %v1300 = vpack.c.b16 %v856, %v852
    %v1301 = vpack.c.b16 %v857, %v853
    %v1302 = vpack.c.b16 %v862, %v858
    %v1303 = vpack.c.b16 %v863, %v859
    %v1304 = vpack.c.b16 %v864, %v860
    %v1305 = vpack.c.b16 %v865, %v861
    %v1306 = vpack.c.b16 %v870, %v866
    %v1307 = vpack.c.b16 %v871, %v867
    %v1308 = vpack.c.b16 %v872, %v868
    %v1309 = vpack.c.b16 %v873, %v869
    %v1310 = vpack.c.b16 %v878, %v874
    %v1311 = vpack.c.b16 %v879, %v875
    %v1312 = vpack.c.b16 %v880, %v876
    %v1313 = vpack.c.b16 %v881, %v877
    %v1314 = vpack.c.b16 %v886, %v882
    %v1315 = vpack.c.b16 %v887, %v883
    %v1316 = vpack.c.b16 %v888, %v884
    %v1317 = vpack.c.b16 %v889, %v885
    %v1318 = vpack.c.b16 %v894, %v890
    %v1319 = vpack.c.b16 %v895, %v891
    %v1320 = vpack.c.b16 %v896, %v892
    %v1321 = vpack.c.b16 %v897, %v893
    %v1322 = vpack.c.b16 %v902, %v898
    %v1323 = vpack.c.b16 %v903, %v899
    %v1324 = vpack.c.b16 %v904, %v900
    %v1325 = vpack.c.b16 %v905, %v901
    %v1326 = vpack.c.b16 %v910, %v906
    %v1327 = vpack.c.b16 %v911, %v907
    %v1328 = vpack.c.b16 %v912, %v908
    %v1329 = vpack.c.b16 %v913, %v909
    %v1330 = vpack.c.b16 %v918, %v914
    %v1331 = vpack.c.b16 %v919, %v915
    %v1332 = vpack.c.b16 %v920, %v916
    %v1333 = vpack.c.b16 %v921, %v917
    %v1334 = vpack.c.b16 %v926, %v922
    %v1335 = vpack.c.b16 %v927, %v923
    %v1336 = vpack.c.b16 %v928, %v924
    %v1337 = vpack.c.b16 %v929, %v925
    %v1338 = vpack.c.b16 %v934, %v930
    %v1339 = vpack.c.b16 %v935, %v931
    %v1340 = vpack.c.b16 %v936, %v932
    %v1341 = vpack.c.b16 %v937, %v933
    %v1342 = vpack.c.b16 %v942, %v938
    %v1343 = vpack.c.b16 %v943, %v939
    %v1344 = vpack.c.b16 %v944, %v940
    %v1345 = vpack.c.b16 %v945, %v941
    %v1346 = vpack.c.b16 %v950, %v946
    %v1347 = vpack.c.b16 %v951, %v947
    %v1348 = vpack.c.b16 %v952, %v948
    %v1349 = vpack.c.b16 %v953, %v949
    %v1350 = vpack.c.b16 %v958, %v954
    %v1351 = vpack.c.b16 %v959, %v955
    %v1352 = vpack.c.b16 %v960, %v956
    %v1353 = vpack.c.b16 %v961, %v957
    %v1354 = vpack.c.b16 %v966, %v962
    %v1355 = vpack.c.b16 %v967, %v963
    %v1356 = vpack.c.b16 %v968, %v964
    %v1357 = vpack.c.b16 %v969, %v965
    %v1358 = vpack.c.b16 %v974, %v970
    %v1359 = vpack.c.b16 %v975, %v971
    %v1360 = vpack.c.b16 %v976, %v972
    %v1361 = vpack.c.b16 %v977, %v973
    %v1362 = vpack.c.b16 %v982, %v978
    %v1363 = vpack.c.b16 %v983, %v979
    %v1364 = vpack.c.b16 %v984, %v980
    %v1365 = vpack.c.b16 %v985, %v981
    %v1366 = vpack.c.b16 %v990, %v986
    %v1367 = vpack.c.b16 %v991, %v987
    %v1368 = vpack.c.b16 %v992, %v988
    %v1369 = vpack.c.b16 %v993, %v989
    %v1370 = vpack.c.b16 %v998, %v994
    %v1371 = vpack.c.b16 %v999, %v995
    %v1372 = vpack.c.b16 %v1000, %v996
    %v1373 = vpack.c.b16 %v1001, %v997
    %v1374 = vpack.c.b16 %v1006, %v1002
    %v1375 = vpack.c.b16 %v1007, %v1003
    %v1376 = vpack.c.b16 %v1008, %v1004
    %v1377 = vpack.c.b16 %v1009, %v1005
    %v1378 = vpack.c.b16 %v1014, %v1010
    %v1379 = vpack.c.b16 %v1015, %v1011
    %v1380 = vpack.c.b16 %v1016, %v1012
    %v1381 = vpack.c.b16 %v1017, %v1013
    %v1382 = vpack.c.b16 %v1022, %v1018
    %v1383 = vpack.c.b16 %v1023, %v1019
    %v1384 = vpack.c.b16 %v1024, %v1020
    %v1385 = vpack.c.b16 %v1025, %v1021
    %v1386 = vpack.c.b16 %v1030, %v1026
    %v1387 = vpack.c.b16 %v1031, %v1027
    %v1388 = vpack.c.b16 %v1032, %v1028
    %v1389 = vpack.c.b16 %v1033, %v1029
    %v1390 = vpack.c.b16 %v1038, %v1034
    %v1391 = vpack.c.b16 %v1039, %v1035
    %v1392 = vpack.c.b16 %v1040, %v1036
    %v1393 = vpack.c.b16 %v1041, %v1037
    %v1394 = vpack.c.b16 %v1046, %v1042
    %v1395 = vpack.c.b16 %v1047, %v1043
    %v1396 = vpack.c.b16 %v1048, %v1044
    %v1397 = vpack.c.b16 %v1049, %v1045
    %v1398 = vpack.c.b16 %v1054, %v1050
    %v1399 = vpack.c.b16 %v1055, %v1051
    %v1400 = vpack.c.b16 %v1056, %v1052
    %v1401 = vpack.c.b16 %v1057, %v1053
    %v1402 = vpack.c.b16 %v1062, %v1058
    %v1403 = vpack.c.b16 %v1063, %v1059
    %v1404 = vpack.c.b16 %v1064, %v1060
    %v1405 = vpack.c.b16 %v1065, %v1061
    %v1406 = vpack.c.b16 %v1070, %v1066
    %v1407 = vpack.c.b16 %v1071, %v1067
    %v1408 = vpack.c.b16 %v1072, %v1068
    %v1409 = vpack.c.b16 %v1073, %v1069
    %v1410 = vpack.c.b16 %v1078, %v1074
    %v1411 = vpack.c.b16 %v1079, %v1075
    %v1412 = vpack.c.b16 %v1080, %v1076
    %v1413 = vpack.c.b16 %v1081, %v1077
    %v1414 = vpack.c.b16 %v1086, %v1082
    %v1415 = vpack.c.b16 %v1087, %v1083
    %v1416 = vpack.c.b16 %v1088, %v1084
    %v1417 = vpack.c.b16 %v1089, %v1085
    %v1418 = vpack.c.b16 %v1094, %v1090
    %v1419 = vpack.c.b16 %v1095, %v1091
    %v1420 = vpack.c.b16 %v1096, %v1092
    %v1421 = vpack.c.b16 %v1097, %v1093
    %v1422 = vpack.c.b16 %v1102, %v1098
    %v1423 = vpack.c.b16 %v1103, %v1099
    %v1424 = vpack.c.b16 %v1104, %v1100
    %v1425 = vpack.c.b16 %v1105, %v1101
    %v1426 = vpack.c.b16 %v1110, %v1106
    %v1427 = vpack.c.b16 %v1111, %v1107
    %v1428 = vpack.c.b16 %v1112, %v1108
    %v1429 = vpack.c.b16 %v1113, %v1109
    %v1430 = vpack.c.b16 %v1118, %v1114
    %v1431 = vpack.c.b16 %v1119, %v1115
    %v1432 = vpack.c.b16 %v1120, %v1116
    %v1433 = vpack.c.b16 %v1121, %v1117
    %v1434 = vpack.c.b16 %v1126, %v1122
    %v1435 = vpack.c.b16 %v1127, %v1123
    %v1436 = vpack.c.b16 %v1128, %v1124
    %v1437 = vpack.c.b16 %v1129, %v1125
    %v1438 = vpack.c.b16 %v1134, %v1130
    %v1439 = vpack.c.b16 %v1135, %v1131
    %v1440 = vpack.c.b16 %v1136, %v1132
    %v1441 = vpack.c.b16 %v1137, %v1133
    %v1442 = vpack.c.b16 %v1142, %v1138
    %v1443 = vpack.c.b16 %v1143, %v1139
    %v1444 = vpack.c.b16 %v1144, %v1140
    %v1445 = vpack.c.b16 %v1145, %v1141
    %v1446 = vpack.c.b16 %v1150, %v1146
    %v1447 = vpack.c.b16 %v1151, %v1147
    %v1448 = vpack.c.b16 %v1152, %v1148
    %v1449 = vpack.c.b16 %v1153, %v1149
    %v1450 = vpack.c.b16 %v1158, %v1154
    %v1451 = vpack.c.b16 %v1159, %v1155
    %v1452 = vpack.c.b16 %v1160, %v1156
    %v1453 = vpack.c.b16 %v1161, %v1157
    %v1454 = vpack.c.b16 %v1166, %v1162
    %v1455 = vpack.c.b16 %v1167, %v1163
    %v1456 = vpack.c.b16 %v1168, %v1164
    %v1457 = vpack.c.b16 %v1169, %v1165
    %v1458 = vpack.c.b16 %v1174, %v1170
    %v1459 = vpack.c.b16 %v1175, %v1171
    %v1460 = vpack.c.b16 %v1176, %v1172
    %v1461 = vpack.c.b16 %v1177, %v1173
    %v1462 = vpack.c.b16 %v1182, %v1178
    %v1463 = vpack.c.b16 %v1183, %v1179
    %v1464 = vpack.c.b16 %v1184, %v1180
    %v1465 = vpack.c.b16 %v1185, %v1181
    %v1466 = vpack.c.b16 %v1190, %v1186
    %v1467 = vpack.c.b16 %v1191, %v1187
    %v1468 = vpack.c.b16 %v1192, %v1188
    %v1469 = vpack.c.b16 %v1193, %v1189
    %v1470 = vpack.c.b16 %v1198, %v1194
    %v1471 = vpack.c.b16 %v1199, %v1195
    %v1472 = vpack.c.b16 %v1200, %v1196
    %v1473 = vpack.c.b16 %v1201, %v1197
    %v1474 = vpack.c.b16 %v1206, %v1202
    %v1475 = vpack.c.b16 %v1207, %v1203
    %v1476 = vpack.c.b16 %v1208, %v1204
    %v1477 = vpack.c.b16 %v1209, %v1205
    %v1478 = vpack.c.b16 %v1214, %v1210
    %v1479 = vpack.c.b16 %v1215, %v1211
    %v1480 = vpack.c.b16 %v1216, %v1212
    %v1481 = vpack.c.b16 %v1217, %v1213
    %v1482 = vpack.c.b16 %v1222, %v1218
    %v1483 = vpack.c.b16 %v1223, %v1219
    %v1484 = vpack.c.b16 %v1224, %v1220
    %v1485 = vpack.c.b16 %v1225, %v1221
    %v1486 = vpack.c.b16 %v1230, %v1226
    %v1487 = vpack.c.b16 %v1231, %v1227
    %v1488 = vpack.c.b16 %v1232, %v1228
    %v1489 = vpack.c.b16 %v1233, %v1229
    %1746 = vmatprep.subr.bf16.mxu0 %v1235
    %1747 = vmatpush1.bf16.msra.mxu0 %v1234
    %1748 = vmatprep.subr.bf16.mxu0 %v1239
    %1749 = vmatpush1.bf16.msra.mxu0 %v1238
    %1750 = vmatprep.subr.bf16.mxu0 %v1243
    %1751 = vmatpush1.bf16.msra.mxu0 %v1242
    %1752 = vmatprep.subr.bf16.mxu0 %v1247
    %1753 = vmatpush1.bf16.msra.mxu0 %v1246
    %1754 = vmatprep.subr.bf16.mxu0 %v1251
    %1755 = vmatpush1.bf16.msra.mxu0 %v1250
    %1756 = vmatprep.subr.bf16.mxu0 %v1255
    %1757 = vmatpush1.bf16.msra.mxu0 %v1254
    %1758 = vmatprep.subr.bf16.mxu0 %v1259
    %1759 = vmatpush1.bf16.msra.mxu0 %v1258
    %1760 = vmatprep.subr.bf16.mxu0 %v1263
    %1761 = vmatpush1.bf16.msra.mxu0 %v1262
    %1762 = vmatprep.subr.bf16.mxu0 %v1267
    %1763 = vmatpush1.bf16.msra.mxu0 %v1266
    %1764 = vmatprep.subr.bf16.mxu0 %v1271
    %1765 = vmatpush1.bf16.msra.mxu0 %v1270
    %1766 = vmatprep.subr.bf16.mxu0 %v1275
    %1767 = vmatpush1.bf16.msra.mxu0 %v1274
    %1768 = vmatprep.subr.bf16.mxu0 %v1279
    %1769 = vmatpush1.bf16.msra.mxu0 %v1278
    %1770 = vmatprep.subr.bf16.mxu0 %v1283
    %1771 = vmatpush1.bf16.msra.mxu0 %v1282
    %1772 = vmatprep.subr.bf16.mxu0 %v1287
    %1773 = vmatpush1.bf16.msra.mxu0 %v1286
    %1774 = vmatprep.subr.bf16.mxu0 %v1291
    %1775 = vmatpush1.bf16.msra.mxu0 %v1290
    %1776 = vmatprep.subr.bf16.mxu0 %v1295
    %1777 = vmatpush1.bf16.msra.mxu0 %v1294
    %1778 = vmatprep.mubr.bf16.mxu0 %v181
    %1779 = vmatmul.mubr.bf16.gmra.mrb[0].mxu0 %v180
    %v1780 = vpop.f32.mrb[0].mxu0
    %v1781 = vadd.f32 %v449, %v1780
    %v1782 = vpop.f32.mrb[0].mxu0
    %v1783 = vadd.f32 %v453, %v1782
    %v1784 = vpop.f32.mrb[0].mxu0
    %v1785 = vpop.f32.mrb[0].mxu0
    %1786 = vdwg.mxu0
    %1787 = vmatprep.subr.bf16.mxu0 %v1299
    %1788 = vmatpush1.bf16.msra.mxu0 %v1298
    %1789 = vmatprep.subr.bf16.mxu0 %v1303
    %1790 = vmatpush1.bf16.msra.mxu0 %v1302
    %1791 = vmatprep.subr.bf16.mxu0 %v1307
    %1792 = vmatpush1.bf16.msra.mxu0 %v1306
    %1793 = vmatprep.subr.bf16.mxu0 %v1311
    %1794 = vmatpush1.bf16.msra.mxu0 %v1310
    %1795 = vmatprep.subr.bf16.mxu0 %v1315
    %1796 = vmatpush1.bf16.msra.mxu0 %v1314
    %1797 = vmatprep.subr.bf16.mxu0 %v1319
    %1798 = vmatpush1.bf16.msra.mxu0 %v1318
    %1799 = vmatprep.subr.bf16.mxu0 %v1323
    %1800 = vmatpush1.bf16.msra.mxu0 %v1322
    %1801 = vmatprep.subr.bf16.mxu0 %v1327
    %1802 = vmatpush1.bf16.msra.mxu0 %v1326
    %1803 = vmatprep.subr.bf16.mxu0 %v1331
    %1804 = vmatpush1.bf16.msra.mxu0 %v1330
    %1805 = vmatprep.subr.bf16.mxu0 %v1335
    %1806 = vmatpush1.bf16.msra.mxu0 %v1334
    %1807 = vmatprep.subr.bf16.mxu0 %v1339
    %1808 = vmatpush1.bf16.msra.mxu0 %v1338
    %1809 = vmatprep.subr.bf16.mxu0 %v1343
    %1810 = vmatpush1.bf16.msra.mxu0 %v1342
    %1811 = vmatprep.subr.bf16.mxu0 %v1347
    %1812 = vmatpush1.bf16.msra.mxu0 %v1346
    %1813 = vmatprep.subr.bf16.mxu0 %v1351
    %1814 = vmatpush1.bf16.msra.mxu0 %v1350
    %1815 = vmatprep.subr.bf16.mxu0 %v1355
    %1816 = vmatpush1.bf16.msra.mxu0 %v1354
    %1817 = vmatprep.subr.bf16.mxu0 %v1359
    %1818 = vmatpush1.bf16.msra.mxu0 %v1358
    %1819 = vmatprep.mubr.bf16.mxu0 %v183
    %1820 = vmatmul.mubr.bf16.gmra.mrb[0].mxu0 %v182
    %v1821 = vpop.f32.mrb[0].mxu0
    %v1822 = vadd.f32 %v1781, %v1821
    %v1823 = vpop.f32.mrb[0].mxu0
    %v1824 = vadd.f32 %v1783, %v1823
    %v1825 = vpop.f32.mrb[0].mxu0
    %v1826 = vpop.f32.mrb[0].mxu0
    %1827 = vdwg.mxu0
    %1828 = vmatprep.subr.bf16.mxu0 %v1363
    %1829 = vmatpush1.bf16.msra.mxu0 %v1362
    %1830 = vmatprep.subr.bf16.mxu0 %v1367
    %1831 = vmatpush1.bf16.msra.mxu0 %v1366
    %1832 = vmatprep.subr.bf16.mxu0 %v1371
    %1833 = vmatpush1.bf16.msra.mxu0 %v1370
    %1834 = vmatprep.subr.bf16.mxu0 %v1375
    %1835 = vmatpush1.bf16.msra.mxu0 %v1374
    %1836 = vmatprep.subr.bf16.mxu0 %v1379
    %1837 = vmatpush1.bf16.msra.mxu0 %v1378
    %1838 = vmatprep.subr.bf16.mxu0 %v1383
    %1839 = vmatpush1.bf16.msra.mxu0 %v1382
    %1840 = vmatprep.subr.bf16.mxu0 %v1387
    %1841 = vmatpush1.bf16.msra.mxu0 %v1386
    %1842 = vmatprep.subr.bf16.mxu0 %v1391
    %1843 = vmatpush1.bf16.msra.mxu0 %v1390
    %1844 = vmatprep.subr.bf16.mxu0 %v1395
    %1845 = vmatpush1.bf16.msra.mxu0 %v1394
    %1846 = vmatprep.subr.bf16.mxu0 %v1399
    %1847 = vmatpush1.bf16.msra.mxu0 %v1398
    %1848 = vmatprep.subr.bf16.mxu0 %v1403
    %1849 = vmatpush1.bf16.msra.mxu0 %v1402
    %1850 = vmatprep.subr.bf16.mxu0 %v1407
    %1851 = vmatpush1.bf16.msra.mxu0 %v1406
    %1852 = vmatprep.subr.bf16.mxu0 %v1411
    %1853 = vmatpush1.bf16.msra.mxu0 %v1410
    %1854 = vmatprep.subr.bf16.mxu0 %v1415
    %1855 = vmatpush1.bf16.msra.mxu0 %v1414
    %1856 = vmatprep.subr.bf16.mxu0 %v1419
    %1857 = vmatpush1.bf16.msra.mxu0 %v1418
    %1858 = vmatprep.subr.bf16.mxu0 %v1423
    %1859 = vmatpush1.bf16.msra.mxu0 %v1422
    %1860 = vmatprep.mubr.bf16.mxu0 %v185
    %1861 = vmatmul.mubr.bf16.gmra.mrb[0].mxu0 %v184
    %v1862 = vpop.f32.mrb[0].mxu0
    %v1863 = vadd.f32 %v1822, %v1862
    %v1864 = vpop.f32.mrb[0].mxu0
    %v1865 = vadd.f32 %v1824, %v1864
    %v1866 = vpop.f32.mrb[0].mxu0
    %v1867 = vpop.f32.mrb[0].mxu0
    %1868 = vdwg.mxu0
    %1869 = vmatprep.subr.bf16.mxu0 %v1427
    %1870 = vmatpush1.bf16.msra.mxu0 %v1426
    %1871 = vmatprep.subr.bf16.mxu0 %v1431
    %1872 = vmatpush1.bf16.msra.mxu0 %v1430
    %1873 = vmatprep.subr.bf16.mxu0 %v1435
    %1874 = vmatpush1.bf16.msra.mxu0 %v1434
    %1875 = vmatprep.subr.bf16.mxu0 %v1439
    %1876 = vmatpush1.bf16.msra.mxu0 %v1438
    %1877 = vmatprep.subr.bf16.mxu0 %v1443
    %1878 = vmatpush1.bf16.msra.mxu0 %v1442
    %1879 = vmatprep.subr.bf16.mxu0 %v1447
    %1880 = vmatpush1.bf16.msra.mxu0 %v1446
    %1881 = vmatprep.subr.bf16.mxu0 %v1451
    %1882 = vmatpush1.bf16.msra.mxu0 %v1450
    %1883 = vmatprep.subr.bf16.mxu0 %v1455
    %1884 = vmatpush1.bf16.msra.mxu0 %v1454
    %1885 = vmatprep.subr.bf16.mxu0 %v1459
    %1886 = vmatpush1.bf16.msra.mxu0 %v1458
    %1887 = vmatprep.subr.bf16.mxu0 %v1463
    %1888 = vmatpush1.bf16.msra.mxu0 %v1462
    %1889 = vmatprep.subr.bf16.mxu0 %v1467
    %1890 = vmatpush1.bf16.msra.mxu0 %v1466
    %1891 = vmatprep.subr.bf16.mxu0 %v1471
    %1892 = vmatpush1.bf16.msra.mxu0 %v1470
    %1893 = vmatprep.subr.bf16.mxu0 %v1475
    %1894 = vmatpush1.bf16.msra.mxu0 %v1474
    %1895 = vmatprep.subr.bf16.mxu0 %v1479
    %1896 = vmatpush1.bf16.msra.mxu0 %v1478
    %1897 = vmatprep.subr.bf16.mxu0 %v1483
    %1898 = vmatpush1.bf16.msra.mxu0 %v1482
    %1899 = vmatprep.subr.bf16.mxu0 %v1487
    %1900 = vmatpush1.bf16.msra.mxu0 %v1486
    %1901 = vmatprep.mubr.bf16.mxu0 %v187
    %1902 = vmatmul.mubr.bf16.gmra.mrb[0].mxu0 %v186
    %v1903 = vpop.f32.mrb[0].mxu0
    %v1904 = vadd.f32 %v1863, %v1903
    %v1905 = vpop.f32.mrb[0].mxu0
    %v1906 = vadd.f32 %v1865, %v1905
    %v1907 = vpop.f32.mrb[0].mxu0
    %v1908 = vpop.f32.mrb[0].mxu0
    %1909 = vdwg.mxu0
    %1910 = vmatprep.subr.bf16.mxu0 %v1237
    %1911 = vmatpush1.bf16.msra.mxu0 %v1236
    %1912 = vmatprep.subr.bf16.mxu0 %v1241
    %1913 = vmatpush1.bf16.msra.mxu0 %v1240
    %1914 = vmatprep.subr.bf16.mxu0 %v1245
    %1915 = vmatpush1.bf16.msra.mxu0 %v1244
    %1916 = vmatprep.subr.bf16.mxu0 %v1249
    %1917 = vmatpush1.bf16.msra.mxu0 %v1248
    %1918 = vmatprep.subr.bf16.mxu0 %v1253
    %1919 = vmatpush1.bf16.msra.mxu0 %v1252
    %1920 = vmatprep.subr.bf16.mxu0 %v1257
    %1921 = vmatpush1.bf16.msra.mxu0 %v1256
    %1922 = vmatprep.subr.bf16.mxu0 %v1261
    %1923 = vmatpush1.bf16.msra.mxu0 %v1260
    %1924 = vmatprep.subr.bf16.mxu0 %v1265
    %1925 = vmatpush1.bf16.msra.mxu0 %v1264
    %1926 = vmatprep.subr.bf16.mxu0 %v1269
    %1927 = vmatpush1.bf16.msra.mxu0 %v1268
    %1928 = vmatprep.subr.bf16.mxu0 %v1273
    %1929 = vmatpush1.bf16.msra.mxu0 %v1272
    %1930 = vmatprep.subr.bf16.mxu0 %v1277
    %1931 = vmatpush1.bf16.msra.mxu0 %v1276
    %1932 = vmatprep.subr.bf16.mxu0 %v1281
    %1933 = vmatpush1.bf16.msra.mxu0 %v1280
    %1934 = vmatprep.subr.bf16.mxu0 %v1285
    %1935 = vmatpush1.bf16.msra.mxu0 %v1284
    %1936 = vmatprep.subr.bf16.mxu0 %v1289
    %1937 = vmatpush1.bf16.msra.mxu0 %v1288
    %1938 = vmatprep.subr.bf16.mxu0 %v1293
    %1939 = vmatpush1.bf16.msra.mxu0 %v1292
    %1940 = vmatprep.subr.bf16.mxu0 %v1297
    %1941 = vmatpush1.bf16.msra.mxu0 %v1296
    %1942 = vmatprep.mubr.bf16.mxu0 %v181
    %1943 = vmatmul.mubr.bf16.gmra.mrb[0].mxu0 %v180
    %v1944 = vpop.f32.mrb[0].mxu0
    %v1945 = vadd.f32 %v457, %v1944
    %v1946 = vpop.f32.mrb[0].mxu0
    %v1947 = vadd.f32 %v461, %v1946
    %v1948 = vpop.f32.mrb[0].mxu0
    %v1949 = vpop.f32.mrb[0].mxu0
    %1950 = vdwg.mxu0
    %1951 = vmatprep.subr.bf16.mxu0 %v1301
    %1952 = vmatpush1.bf16.msra.mxu0 %v1300
    %1953 = vmatprep.subr.bf16.mxu0 %v1305
    %1954 = vmatpush1.bf16.msra.mxu0 %v1304
    %1955 = vmatprep.subr.bf16.mxu0 %v1309
    %1956 = vmatpush1.bf16.msra.mxu0 %v1308
    %1957 = vmatprep.subr.bf16.mxu0 %v1313
    %1958 = vmatpush1.bf16.msra.mxu0 %v1312
    %1959 = vmatprep.subr.bf16.mxu0 %v1317
    %1960 = vmatpush1.bf16.msra.mxu0 %v1316
    %1961 = vmatprep.subr.bf16.mxu0 %v1321
    %1962 = vmatpush1.bf16.msra.mxu0 %v1320
    %1963 = vmatprep.subr.bf16.mxu0 %v1325
    %1964 = vmatpush1.bf16.msra.mxu0 %v1324
    %1965 = vmatprep.subr.bf16.mxu0 %v1329
    %1966 = vmatpush1.bf16.msra.mxu0 %v1328
    %1967 = vmatprep.subr.bf16.mxu0 %v1333
    %1968 = vmatpush1.bf16.msra.mxu0 %v1332
    %1969 = vmatprep.subr.bf16.mxu0 %v1337
    %1970 = vmatpush1.bf16.msra.mxu0 %v1336
    %1971 = vmatprep.subr.bf16.mxu0 %v1341
    %1972 = vmatpush1.bf16.msra.mxu0 %v1340
    %1973 = vmatprep.subr.bf16.mxu0 %v1345
    %1974 = vmatpush1.bf16.msra.mxu0 %v1344
    %1975 = vmatprep.subr.bf16.mxu0 %v1349
    %1976 = vmatpush1.bf16.msra.mxu0 %v1348
    %1977 = vmatprep.subr.bf16.mxu0 %v1353
    %1978 = vmatpush1.bf16.msra.mxu0 %v1352
    %1979 = vmatprep.subr.bf16.mxu0 %v1357
    %1980 = vmatpush1.bf16.msra.mxu0 %v1356
    %1981 = vmatprep.subr.bf16.mxu0 %v1361
    %1982 = vmatpush1.bf16.msra.mxu0 %v1360
    %1983 = vmatprep.mubr.bf16.mxu0 %v183
    %1984 = vmatmul.mubr.bf16.gmra.mrb[0].mxu0 %v182
    %v1985 = vpop.f32.mrb[0].mxu0
    %v1986 = vadd.f32 %v1945, %v1985
    %v1987 = vpop.f32.mrb[0].mxu0
    %v1988 = vadd.f32 %v1947, %v1987
    %v1989 = vpop.f32.mrb[0].mxu0
    %v1990 = vpop.f32.mrb[0].mxu0
    %1991 = vdwg.mxu0
    %1992 = vmatprep.subr.bf16.mxu0 %v1365
    %1993 = vmatpush1.bf16.msra.mxu0 %v1364
    %1994 = vmatprep.subr.bf16.mxu0 %v1369
    %1995 = vmatpush1.bf16.msra.mxu0 %v1368
    %1996 = vmatprep.subr.bf16.mxu0 %v1373
    %1997 = vmatpush1.bf16.msra.mxu0 %v1372
    %1998 = vmatprep.subr.bf16.mxu0 %v1377
    %1999 = vmatpush1.bf16.msra.mxu0 %v1376
    %2000 = vmatprep.subr.bf16.mxu0 %v1381
    %2001 = vmatpush1.bf16.msra.mxu0 %v1380
    %2002 = vmatprep.subr.bf16.mxu0 %v1385
    %2003 = vmatpush1.bf16.msra.mxu0 %v1384
    %2004 = vmatprep.subr.bf16.mxu0 %v1389
    %2005 = vmatpush1.bf16.msra.mxu0 %v1388
    %2006 = vmatprep.subr.bf16.mxu0 %v1393
    %2007 = vmatpush1.bf16.msra.mxu0 %v1392
    %2008 = vmatprep.subr.bf16.mxu0 %v1397
    %2009 = vmatpush1.bf16.msra.mxu0 %v1396
    %2010 = vmatprep.subr.bf16.mxu0 %v1401
    %2011 = vmatpush1.bf16.msra.mxu0 %v1400
    %2012 = vmatprep.subr.bf16.mxu0 %v1405
    %2013 = vmatpush1.bf16.msra.mxu0 %v1404
    %2014 = vmatprep.subr.bf16.mxu0 %v1409
    %2015 = vmatpush1.bf16.msra.mxu0 %v1408
    %2016 = vmatprep.subr.bf16.mxu0 %v1413
    %2017 = vmatpush1.bf16.msra.mxu0 %v1412
    %2018 = vmatprep.subr.bf16.mxu0 %v1417
    %2019 = vmatpush1.bf16.msra.mxu0 %v1416
    %2020 = vmatprep.subr.bf16.mxu0 %v1421
    %2021 = vmatpush1.bf16.msra.mxu0 %v1420
    %2022 = vmatprep.subr.bf16.mxu0 %v1425
    %2023 = vmatpush1.bf16.msra.mxu0 %v1424
    %2024 = vmatprep.mubr.bf16.mxu0 %v185
    %2025 = vmatmul.mubr.bf16.gmra.mrb[0].mxu0 %v184
    %v2026 = vpop.f32.mrb[0].mxu0
    %v2027 = vadd.f32 %v1986, %v2026
    %v2028 = vpop.f32.mrb[0].mxu0
    %v2029 = vadd.f32 %v1988, %v2028
    %v2030 = vpop.f32.mrb[0].mxu0
    %v2031 = vpop.f32.mrb[0].mxu0
    %2032 = vdwg.mxu0
    %2033 = vmatprep.subr.bf16.mxu0 %v1429
    %2034 = vmatpush1.bf16.msra.mxu0 %v1428
    %2035 = vmatprep.subr.bf16.mxu0 %v1433
    %2036 = vmatpush1.bf16.msra.mxu0 %v1432
    %2037 = vmatprep.subr.bf16.mxu0 %v1437
    %2038 = vmatpush1.bf16.msra.mxu0 %v1436
    %2039 = vmatprep.subr.bf16.mxu0 %v1441
    %2040 = vmatpush1.bf16.msra.mxu0 %v1440
    %2041 = vmatprep.subr.bf16.mxu0 %v1445
    %2042 = vmatpush1.bf16.msra.mxu0 %v1444
    %2043 = vmatprep.subr.bf16.mxu0 %v1449
    %2044 = vmatpush1.bf16.msra.mxu0 %v1448
    %2045 = vmatprep.subr.bf16.mxu0 %v1453
    %2046 = vmatpush1.bf16.msra.mxu0 %v1452
    %2047 = vmatprep.subr.bf16.mxu0 %v1457
    %2048 = vmatpush1.bf16.msra.mxu0 %v1456
    %2049 = vmatprep.subr.bf16.mxu0 %v1461
    %2050 = vmatpush1.bf16.msra.mxu0 %v1460
    %2051 = vmatprep.subr.bf16.mxu0 %v1465
    %2052 = vmatpush1.bf16.msra.mxu0 %v1464
    %2053 = vmatprep.subr.bf16.mxu0 %v1469
    %2054 = vmatpush1.bf16.msra.mxu0 %v1468
    %2055 = vmatprep.subr.bf16.mxu0 %v1473
    %2056 = vmatpush1.bf16.msra.mxu0 %v1472
    %2057 = vmatprep.subr.bf16.mxu0 %v1477
    %2058 = vmatpush1.bf16.msra.mxu0 %v1476
    %2059 = vmatprep.subr.bf16.mxu0 %v1481
    %2060 = vmatpush1.bf16.msra.mxu0 %v1480
    %2061 = vmatprep.subr.bf16.mxu0 %v1485
    %2062 = vmatpush1.bf16.msra.mxu0 %v1484
    %2063 = vmatprep.subr.bf16.mxu0 %v1489
    %2064 = vmatpush1.bf16.msra.mxu0 %v1488
    %2065 = vmatprep.mubr.bf16.mxu0 %v187
    %2066 = vmatmul.mubr.bf16.gmra.mrb[0].mxu0 %v186
    %v2067 = vpop.f32.mrb[0].mxu0
    %v2068 = vadd.f32 %v2027, %v2067
    %v2069 = vpop.f32.mrb[0].mxu0
    %v2070 = vadd.f32 %v2029, %v2069
    %v2071 = vpop.f32.mrb[0].mxu0
    %v2072 = vpop.f32.mrb[0].mxu0
    %2073 = vdwg.mxu0
    %v2074 = vmax.f32 %v1904, 0.0
    %v2075 = vmax.f32 %v1906, 0.0
    %v2076 = vmax.f32 %v2068, 0.0
    %v2077 = vmax.f32 %v2070, 0.0
    %v2078 = vpack.c.bf16 %v2074, %v2074
    %v2079 = vpack.c.bf16 %v2075, %v2075
    %v2080 = vpack.c.bf16 %v2076, %v2076
    %v2081 = vpack.c.bf16 %v2077, %v2077
    %v2082 = vld [vmem:[#allocation4] sm:$0xff]
    %v2083 = vld [vmem:[#allocation4 + $0x8] sm:$0xff]
    %v2084 = vld [vmem:[#allocation4 + $0x10] sm:$0xff]
    %v2085 = vld [vmem:[#allocation4 + $0x18] sm:$0xff]
    %v2086 = vld [vmem:[#allocation4 + $0x20] sm:$0xff]
    %v2087 = vld [vmem:[#allocation4 + $0x28] sm:$0xff]
    %v2088 = vld [vmem:[#allocation4 + $0x30] sm:$0xff]
    %v2089 = vld [vmem:[#allocation4 + $0x38] sm:$0xff]
    %v2090 = vld [vmem:[#allocation4 + $0x40] sm:$0xff]
    %v2091 = vld [vmem:[#allocation4 + $0x48] sm:$0xff]
    %v2092 = vld [vmem:[#allocation4 + $0x50] sm:$0xff]
    %v2093 = vld [vmem:[#allocation4 + $0x58] sm:$0xff]
    %v2094 = vld [vmem:[#allocation4 + $0x60] sm:$0xff]
    %v2095 = vld [vmem:[#allocation4 + $0x68] sm:$0xff]
    %v2096 = vld [vmem:[#allocation4 + $0x70] sm:$0xff]
    %v2097 = vld [vmem:[#allocation4 + $0x78] sm:$0xff]
    %v2098 = vld [vmem:[#allocation4 + $0x80] sm:$0xff]
    %v2099 = vld [vmem:[#allocation4 + $0x88] sm:$0xff]
    %v2100 = vld [vmem:[#allocation4 + $0x90] sm:$0xff]
    %v2101 = vld [vmem:[#allocation4 + $0x98] sm:$0xff]
    %v2102 = vld [vmem:[#allocation4 + $0xa0] sm:$0xff]
    %v2103 = vld [vmem:[#allocation4 + $0xa8] sm:$0xff]
    %v2104 = vld [vmem:[#allocation4 + $0xb0] sm:$0xff]
    %v2105 = vld [vmem:[#allocation4 + $0xb8] sm:$0xff]
    %v2106 = vld [vmem:[#allocation4 + $0xc0] sm:$0xff]
    %v2107 = vld [vmem:[#allocation4 + $0xc8] sm:$0xff]
    %v2108 = vld [vmem:[#allocation4 + $0xd0] sm:$0xff]
    %v2109 = vld [vmem:[#allocation4 + $0xd8] sm:$0xff]
    %v2110 = vld [vmem:[#allocation4 + $0xe0] sm:$0xff]
    %v2111 = vld [vmem:[#allocation4 + $0xe8] sm:$0xff]
    %v2112 = vld [vmem:[#allocation4 + $0xf0] sm:$0xff]
    %v2113 = vld [vmem:[#allocation4 + $0xf8] sm:$0xff]
    %v2114 = vld [vmem:[#allocation4 + $0x100] sm:$0xff]
    %v2115 = vld [vmem:[#allocation4 + $0x108] sm:$0xff]
    %v2116 = vld [vmem:[#allocation4 + $0x110] sm:$0xff]
    %v2117 = vld [vmem:[#allocation4 + $0x118] sm:$0xff]
    %v2118 = vld [vmem:[#allocation4 + $0x120] sm:$0xff]
    %v2119 = vld [vmem:[#allocation4 + $0x128] sm:$0xff]
    %v2120 = vld [vmem:[#allocation4 + $0x130] sm:$0xff]
    %v2121 = vld [vmem:[#allocation4 + $0x138] sm:$0xff]
    %v2122 = vld [vmem:[#allocation4 + $0x140] sm:$0xff]
    %v2123 = vld [vmem:[#allocation4 + $0x148] sm:$0xff]
    %v2124 = vld [vmem:[#allocation4 + $0x150] sm:$0xff]
    %v2125 = vld [vmem:[#allocation4 + $0x158] sm:$0xff]
    %v2126 = vld [vmem:[#allocation4 + $0x160] sm:$0xff]
    %v2127 = vld [vmem:[#allocation4 + $0x168] sm:$0xff]
    %v2128 = vld [vmem:[#allocation4 + $0x170] sm:$0xff]
    %v2129 = vld [vmem:[#allocation4 + $0x178] sm:$0xff]
    %v2130 = vld [vmem:[#allocation4 + $0x180] sm:$0xff]
    %v2131 = vld [vmem:[#allocation4 + $0x188] sm:$0xff]
    %v2132 = vld [vmem:[#allocation4 + $0x190] sm:$0xff]
    %v2133 = vld [vmem:[#allocation4 + $0x198] sm:$0xff]
    %v2134 = vld [vmem:[#allocation4 + $0x1a0] sm:$0xff]
    %v2135 = vld [vmem:[#allocation4 + $0x1a8] sm:$0xff]
    %v2136 = vld [vmem:[#allocation4 + $0x1b0] sm:$0xff]
    %v2137 = vld [vmem:[#allocation4 + $0x1b8] sm:$0xff]
    %v2138 = vld [vmem:[#allocation4 + $0x1c0] sm:$0xff]
    %v2139 = vld [vmem:[#allocation4 + $0x1c8] sm:$0xff]
    %v2140 = vld [vmem:[#allocation4 + $0x1d0] sm:$0xff]
    %v2141 = vld [vmem:[#allocation4 + $0x1d8] sm:$0xff]
    %v2142 = vld [vmem:[#allocation4 + $0x1e0] sm:$0xff]
    %v2143 = vld [vmem:[#allocation4 + $0x1e8] sm:$0xff]
    %v2144 = vld [vmem:[#allocation4 + $0x1f0] sm:$0xff]
    %v2145 = vld [vmem:[#allocation4 + $0x1f8] sm:$0xff]
    %v2146 = vld [vmem:[#allocation4 + $0x200] sm:$0xff]
    %v2147 = vld [vmem:[#allocation4 + $0x208] sm:$0xff]
    %v2148 = vld [vmem:[#allocation4 + $0x210] sm:$0xff]
    %v2149 = vld [vmem:[#allocation4 + $0x218] sm:$0xff]
    %v2150 = vld [vmem:[#allocation4 + $0x220] sm:$0xff]
    %v2151 = vld [vmem:[#allocation4 + $0x228] sm:$0xff]
    %v2152 = vld [vmem:[#allocation4 + $0x230] sm:$0xff]
    %v2153 = vld [vmem:[#allocation4 + $0x238] sm:$0xff]
    %v2154 = vld [vmem:[#allocation4 + $0x240] sm:$0xff]
    %v2155 = vld [vmem:[#allocation4 + $0x248] sm:$0xff]
    %v2156 = vld [vmem:[#allocation4 + $0x250] sm:$0xff]
    %v2157 = vld [vmem:[#allocation4 + $0x258] sm:$0xff]
    %v2158 = vld [vmem:[#allocation4 + $0x260] sm:$0xff]
    %v2159 = vld [vmem:[#allocation4 + $0x268] sm:$0xff]
    %v2160 = vld [vmem:[#allocation4 + $0x270] sm:$0xff]
    %v2161 = vld [vmem:[#allocation4 + $0x278] sm:$0xff]
    %v2162 = vld [vmem:[#allocation4 + $0x280] sm:$0xff]
    %v2163 = vld [vmem:[#allocation4 + $0x288] sm:$0xff]
    %v2164 = vld [vmem:[#allocation4 + $0x290] sm:$0xff]
    %v2165 = vld [vmem:[#allocation4 + $0x298] sm:$0xff]
    %v2166 = vld [vmem:[#allocation4 + $0x2a0] sm:$0xff]
    %v2167 = vld [vmem:[#allocation4 + $0x2a8] sm:$0xff]
    %v2168 = vld [vmem:[#allocation4 + $0x2b0] sm:$0xff]
    %v2169 = vld [vmem:[#allocation4 + $0x2b8] sm:$0xff]
    %v2170 = vld [vmem:[#allocation4 + $0x2c0] sm:$0xff]
    %v2171 = vld [vmem:[#allocation4 + $0x2c8] sm:$0xff]
    %v2172 = vld [vmem:[#allocation4 + $0x2d0] sm:$0xff]
    %v2173 = vld [vmem:[#allocation4 + $0x2d8] sm:$0xff]
    %v2174 = vld [vmem:[#allocation4 + $0x2e0] sm:$0xff]
    %v2175 = vld [vmem:[#allocation4 + $0x2e8] sm:$0xff]
    %v2176 = vld [vmem:[#allocation4 + $0x2f0] sm:$0xff]
    %v2177 = vld [vmem:[#allocation4 + $0x2f8] sm:$0xff]
    %v2178 = vld [vmem:[#allocation4 + $0x300] sm:$0xff]
    %v2179 = vld [vmem:[#allocation4 + $0x308] sm:$0xff]
    %v2180 = vld [vmem:[#allocation4 + $0x310] sm:$0xff]
    %v2181 = vld [vmem:[#allocation4 + $0x318] sm:$0xff]
    %v2182 = vld [vmem:[#allocation4 + $0x320] sm:$0xff]
    %v2183 = vld [vmem:[#allocation4 + $0x328] sm:$0xff]
    %v2184 = vld [vmem:[#allocation4 + $0x330] sm:$0xff]
    %v2185 = vld [vmem:[#allocation4 + $0x338] sm:$0xff]
    %v2186 = vld [vmem:[#allocation4 + $0x340] sm:$0xff]
    %v2187 = vld [vmem:[#allocation4 + $0x348] sm:$0xff]
    %v2188 = vld [vmem:[#allocation4 + $0x350] sm:$0xff]
    %v2189 = vld [vmem:[#allocation4 + $0x358] sm:$0xff]
    %v2190 = vld [vmem:[#allocation4 + $0x360] sm:$0xff]
    %v2191 = vld [vmem:[#allocation4 + $0x368] sm:$0xff]
    %v2192 = vld [vmem:[#allocation4 + $0x370] sm:$0xff]
    %v2193 = vld [vmem:[#allocation4 + $0x378] sm:$0xff]
    %v2194 = vld [vmem:[#allocation4 + $0x380] sm:$0xff]
    %v2195 = vld [vmem:[#allocation4 + $0x388] sm:$0xff]
    %v2196 = vld [vmem:[#allocation4 + $0x390] sm:$0xff]
    %v2197 = vld [vmem:[#allocation4 + $0x398] sm:$0xff]
    %v2198 = vld [vmem:[#allocation4 + $0x3a0] sm:$0xff]
    %v2199 = vld [vmem:[#allocation4 + $0x3a8] sm:$0xff]
    %v2200 = vld [vmem:[#allocation4 + $0x3b0] sm:$0xff]
    %v2201 = vld [vmem:[#allocation4 + $0x3b8] sm:$0xff]
    %v2202 = vld [vmem:[#allocation4 + $0x3c0] sm:$0xff]
    %v2203 = vld [vmem:[#allocation4 + $0x3c8] sm:$0xff]
    %v2204 = vld [vmem:[#allocation4 + $0x3d0] sm:$0xff]
    %v2205 = vld [vmem:[#allocation4 + $0x3d8] sm:$0xff]
    %v2206 = vld [vmem:[#allocation4 + $0x3e0] sm:$0xff]
    %v2207 = vld [vmem:[#allocation4 + $0x3e8] sm:$0xff]
    %v2208 = vld [vmem:[#allocation4 + $0x3f0] sm:$0xff]
    %v2209 = vld [vmem:[#allocation4 + $0x3f8] sm:$0xff]
    %v2210 = vld [vmem:[%s4] sm:$0xf]
    %v2212 = vlaneseq
    %v2213 = vshrl.u32 %v2212, 7
    %v2214 = vsub.s32 0, %v2213
    %v2215 = vrot.slane %v2210, %v2214
    %v2216 = vlaneseq
    %v2217 = vshrl.u32 %v2216, 7
    %v2218 = vsub.s32 1, %v2217
    %v2219 = vrot.slane %v2210, %v2218
    %v2220 = vlaneseq
    %v2221 = vshrl.u32 %v2220, 7
    %v2222 = vsub.s32 2, %v2221
    %v2223 = vrot.slane %v2210, %v2222
    %v2224 = vlaneseq
    %v2225 = vshrl.u32 %v2224, 7
    %v2226 = vsub.s32 3, %v2225
    %v2227 = vrot.slane %v2210, %v2226
    %v2360 = vunpack.c.l.b16 %v2082
    %v2361 = vunpack.c.h.b16 %v2082
    %v2362 = vunpack.c.l.b16 %v2083
    %v2363 = vunpack.c.h.b16 %v2083
    %v2364 = vunpack.c.l.b16 %v2084
    %v2365 = vunpack.c.h.b16 %v2084
    %v2366 = vunpack.c.l.b16 %v2085
    %v2367 = vunpack.c.h.b16 %v2085
    %v2368 = vunpack.c.l.b16 %v2086
    %v2369 = vunpack.c.h.b16 %v2086
    %v2370 = vunpack.c.l.b16 %v2087
    %v2371 = vunpack.c.h.b16 %v2087
    %v2372 = vunpack.c.l.b16 %v2088
    %v2373 = vunpack.c.h.b16 %v2088
    %v2374 = vunpack.c.l.b16 %v2089
    %v2375 = vunpack.c.h.b16 %v2089
    %v2376 = vunpack.c.l.b16 %v2090
    %v2377 = vunpack.c.h.b16 %v2090
    %v2378 = vunpack.c.l.b16 %v2091
    %v2379 = vunpack.c.h.b16 %v2091
    %v2380 = vunpack.c.l.b16 %v2092
    %v2381 = vunpack.c.h.b16 %v2092
    %v2382 = vunpack.c.l.b16 %v2093
    %v2383 = vunpack.c.h.b16 %v2093
    %v2384 = vunpack.c.l.b16 %v2094
    %v2385 = vunpack.c.h.b16 %v2094
    %v2386 = vunpack.c.l.b16 %v2095
    %v2387 = vunpack.c.h.b16 %v2095
    %v2388 = vunpack.c.l.b16 %v2096
    %v2389 = vunpack.c.h.b16 %v2096
    %v2390 = vunpack.c.l.b16 %v2097
    %v2391 = vunpack.c.h.b16 %v2097
    %v2392 = vunpack.c.l.b16 %v2098
    %v2393 = vunpack.c.h.b16 %v2098
    %v2394 = vunpack.c.l.b16 %v2099
    %v2395 = vunpack.c.h.b16 %v2099
    %v2396 = vunpack.c.l.b16 %v2100
    %v2397 = vunpack.c.h.b16 %v2100
    %v2398 = vunpack.c.l.b16 %v2101
    %v2399 = vunpack.c.h.b16 %v2101
    %v2400 = vunpack.c.l.b16 %v2102
    %v2401 = vunpack.c.h.b16 %v2102
    %v2402 = vunpack.c.l.b16 %v2103
    %v2403 = vunpack.c.h.b16 %v2103
    %v2404 = vunpack.c.l.b16 %v2104
    %v2405 = vunpack.c.h.b16 %v2104
    %v2406 = vunpack.c.l.b16 %v2105
    %v2407 = vunpack.c.h.b16 %v2105
    %v2408 = vunpack.c.l.b16 %v2106
    %v2409 = vunpack.c.h.b16 %v2106
    %v2410 = vunpack.c.l.b16 %v2107
    %v2411 = vunpack.c.h.b16 %v2107
    %v2412 = vunpack.c.l.b16 %v2108
    %v2413 = vunpack.c.h.b16 %v2108
    %v2414 = vunpack.c.l.b16 %v2109
    %v2415 = vunpack.c.h.b16 %v2109
    %v2416 = vunpack.c.l.b16 %v2110
    %v2417 = vunpack.c.h.b16 %v2110
    %v2418 = vunpack.c.l.b16 %v2111
    %v2419 = vunpack.c.h.b16 %v2111
    %v2420 = vunpack.c.l.b16 %v2112
    %v2421 = vunpack.c.h.b16 %v2112
    %v2422 = vunpack.c.l.b16 %v2113
    %v2423 = vunpack.c.h.b16 %v2113
    %v2424 = vunpack.c.l.b16 %v2114
    %v2425 = vunpack.c.h.b16 %v2114
    %v2426 = vunpack.c.l.b16 %v2115
    %v2427 = vunpack.c.h.b16 %v2115
    %v2428 = vunpack.c.l.b16 %v2116
    %v2429 = vunpack.c.h.b16 %v2116
    %v2430 = vunpack.c.l.b16 %v2117
    %v2431 = vunpack.c.h.b16 %v2117
    %v2432 = vunpack.c.l.b16 %v2118
    %v2433 = vunpack.c.h.b16 %v2118
    %v2434 = vunpack.c.l.b16 %v2119
    %v2435 = vunpack.c.h.b16 %v2119
    %v2436 = vunpack.c.l.b16 %v2120
    %v2437 = vunpack.c.h.b16 %v2120
    %v2438 = vunpack.c.l.b16 %v2121
    %v2439 = vunpack.c.h.b16 %v2121
    %v2440 = vunpack.c.l.b16 %v2122
    %v2441 = vunpack.c.h.b16 %v2122
    %v2442 = vunpack.c.l.b16 %v2123
    %v2443 = vunpack.c.h.b16 %v2123
    %v2444 = vunpack.c.l.b16 %v2124
    %v2445 = vunpack.c.h.b16 %v2124
    %v2446 = vunpack.c.l.b16 %v2125
    %v2447 = vunpack.c.h.b16 %v2125
    %v2448 = vunpack.c.l.b16 %v2126
    %v2449 = vunpack.c.h.b16 %v2126
    %v2450 = vunpack.c.l.b16 %v2127
    %v2451 = vunpack.c.h.b16 %v2127
    %v2452 = vunpack.c.l.b16 %v2128
    %v2453 = vunpack.c.h.b16 %v2128
    %v2454 = vunpack.c.l.b16 %v2129
    %v2455 = vunpack.c.h.b16 %v2129
    %v2456 = vunpack.c.l.b16 %v2130
    %v2457 = vunpack.c.h.b16 %v2130
    %v2458 = vunpack.c.l.b16 %v2131
    %v2459 = vunpack.c.h.b16 %v2131
    %v2460 = vunpack.c.l.b16 %v2132
    %v2461 = vunpack.c.h.b16 %v2132
    %v2462 = vunpack.c.l.b16 %v2133
    %v2463 = vunpack.c.h.b16 %v2133
    %v2464 = vunpack.c.l.b16 %v2134
    %v2465 = vunpack.c.h.b16 %v2134
    %v2466 = vunpack.c.l.b16 %v2135
    %v2467 = vunpack.c.h.b16 %v2135
    %v2468 = vunpack.c.l.b16 %v2136
    %v2469 = vunpack.c.h.b16 %v2136
    %v2470 = vunpack.c.l.b16 %v2137
    %v2471 = vunpack.c.h.b16 %v2137
    %v2472 = vunpack.c.l.b16 %v2138
    %v2473 = vunpack.c.h.b16 %v2138
    %v2474 = vunpack.c.l.b16 %v2139
    %v2475 = vunpack.c.h.b16 %v2139
    %v2476 = vunpack.c.l.b16 %v2140
    %v2477 = vunpack.c.h.b16 %v2140
    %v2478 = vunpack.c.l.b16 %v2141
    %v2479 = vunpack.c.h.b16 %v2141
    %v2480 = vunpack.c.l.b16 %v2142
    %v2481 = vunpack.c.h.b16 %v2142
    %v2482 = vunpack.c.l.b16 %v2143
    %v2483 = vunpack.c.h.b16 %v2143
    %v2484 = vunpack.c.l.b16 %v2144
    %v2485 = vunpack.c.h.b16 %v2144
    %v2486 = vunpack.c.l.b16 %v2145
    %v2487 = vunpack.c.h.b16 %v2145
    %v2488 = vunpack.c.l.b16 %v2146
    %v2489 = vunpack.c.h.b16 %v2146
    %v2490 = vunpack.c.l.b16 %v2147
    %v2491 = vunpack.c.h.b16 %v2147
    %v2492 = vunpack.c.l.b16 %v2148
    %v2493 = vunpack.c.h.b16 %v2148
    %v2494 = vunpack.c.l.b16 %v2149
    %v2495 = vunpack.c.h.b16 %v2149
    %v2496 = vunpack.c.l.b16 %v2150
    %v2497 = vunpack.c.h.b16 %v2150
    %v2498 = vunpack.c.l.b16 %v2151
    %v2499 = vunpack.c.h.b16 %v2151
    %v2500 = vunpack.c.l.b16 %v2152
    %v2501 = vunpack.c.h.b16 %v2152
    %v2502 = vunpack.c.l.b16 %v2153
    %v2503 = vunpack.c.h.b16 %v2153
    %v2504 = vunpack.c.l.b16 %v2154
    %v2505 = vunpack.c.h.b16 %v2154
    %v2506 = vunpack.c.l.b16 %v2155
    %v2507 = vunpack.c.h.b16 %v2155
    %v2508 = vunpack.c.l.b16 %v2156
    %v2509 = vunpack.c.h.b16 %v2156
    %v2510 = vunpack.c.l.b16 %v2157
    %v2511 = vunpack.c.h.b16 %v2157
    %v2512 = vunpack.c.l.b16 %v2158
    %v2513 = vunpack.c.h.b16 %v2158
    %v2514 = vunpack.c.l.b16 %v2159
    %v2515 = vunpack.c.h.b16 %v2159
    %v2516 = vunpack.c.l.b16 %v2160
    %v2517 = vunpack.c.h.b16 %v2160
    %v2518 = vunpack.c.l.b16 %v2161
    %v2519 = vunpack.c.h.b16 %v2161
    %v2520 = vunpack.c.l.b16 %v2162
    %v2521 = vunpack.c.h.b16 %v2162
    %v2522 = vunpack.c.l.b16 %v2163
    %v2523 = vunpack.c.h.b16 %v2163
    %v2524 = vunpack.c.l.b16 %v2164
    %v2525 = vunpack.c.h.b16 %v2164
    %v2526 = vunpack.c.l.b16 %v2165
    %v2527 = vunpack.c.h.b16 %v2165
    %v2528 = vunpack.c.l.b16 %v2166
    %v2529 = vunpack.c.h.b16 %v2166
    %v2530 = vunpack.c.l.b16 %v2167
    %v2531 = vunpack.c.h.b16 %v2167
    %v2532 = vunpack.c.l.b16 %v2168
    %v2533 = vunpack.c.h.b16 %v2168
    %v2534 = vunpack.c.l.b16 %v2169
    %v2535 = vunpack.c.h.b16 %v2169
    %v2536 = vunpack.c.l.b16 %v2170
    %v2537 = vunpack.c.h.b16 %v2170
    %v2538 = vunpack.c.l.b16 %v2171
    %v2539 = vunpack.c.h.b16 %v2171
    %v2540 = vunpack.c.l.b16 %v2172
    %v2541 = vunpack.c.h.b16 %v2172
    %v2542 = vunpack.c.l.b16 %v2173
    %v2543 = vunpack.c.h.b16 %v2173
    %v2544 = vunpack.c.l.b16 %v2174
    %v2545 = vunpack.c.h.b16 %v2174
    %v2546 = vunpack.c.l.b16 %v2175
    %v2547 = vunpack.c.h.b16 %v2175
    %v2548 = vunpack.c.l.b16 %v2176
    %v2549 = vunpack.c.h.b16 %v2176
    %v2550 = vunpack.c.l.b16 %v2177
    %v2551 = vunpack.c.h.b16 %v2177
    %v2552 = vunpack.c.l.b16 %v2178
    %v2553 = vunpack.c.h.b16 %v2178
    %v2554 = vunpack.c.l.b16 %v2179
    %v2555 = vunpack.c.h.b16 %v2179
    %v2556 = vunpack.c.l.b16 %v2180
    %v2557 = vunpack.c.h.b16 %v2180
    %v2558 = vunpack.c.l.b16 %v2181
    %v2559 = vunpack.c.h.b16 %v2181
    %v2560 = vunpack.c.l.b16 %v2182
    %v2561 = vunpack.c.h.b16 %v2182
    %v2562 = vunpack.c.l.b16 %v2183
    %v2563 = vunpack.c.h.b16 %v2183
    %v2564 = vunpack.c.l.b16 %v2184
    %v2565 = vunpack.c.h.b16 %v2184
    %v2566 = vunpack.c.l.b16 %v2185
    %v2567 = vunpack.c.h.b16 %v2185
    %v2568 = vunpack.c.l.b16 %v2186
    %v2569 = vunpack.c.h.b16 %v2186
    %v2570 = vunpack.c.l.b16 %v2187
    %v2571 = vunpack.c.h.b16 %v2187
    %v2572 = vunpack.c.l.b16 %v2188
    %v2573 = vunpack.c.h.b16 %v2188
    %v2574 = vunpack.c.l.b16 %v2189
    %v2575 = vunpack.c.h.b16 %v2189
    %v2576 = vunpack.c.l.b16 %v2190
    %v2577 = vunpack.c.h.b16 %v2190
    %v2578 = vunpack.c.l.b16 %v2191
    %v2579 = vunpack.c.h.b16 %v2191
    %v2580 = vunpack.c.l.b16 %v2192
    %v2581 = vunpack.c.h.b16 %v2192
    %v2582 = vunpack.c.l.b16 %v2193
    %v2583 = vunpack.c.h.b16 %v2193
    %v2584 = vunpack.c.l.b16 %v2194
    %v2585 = vunpack.c.h.b16 %v2194
    %v2586 = vunpack.c.l.b16 %v2195
    %v2587 = vunpack.c.h.b16 %v2195
    %v2588 = vunpack.c.l.b16 %v2196
    %v2589 = vunpack.c.h.b16 %v2196
    %v2590 = vunpack.c.l.b16 %v2197
    %v2591 = vunpack.c.h.b16 %v2197
    %v2592 = vunpack.c.l.b16 %v2198
    %v2593 = vunpack.c.h.b16 %v2198
    %v2594 = vunpack.c.l.b16 %v2199
    %v2595 = vunpack.c.h.b16 %v2199
    %v2596 = vunpack.c.l.b16 %v2200
    %v2597 = vunpack.c.h.b16 %v2200
    %v2598 = vunpack.c.l.b16 %v2201
    %v2599 = vunpack.c.h.b16 %v2201
    %v2600 = vunpack.c.l.b16 %v2202
    %v2601 = vunpack.c.h.b16 %v2202
    %v2602 = vunpack.c.l.b16 %v2203
    %v2603 = vunpack.c.h.b16 %v2203
    %v2604 = vunpack.c.l.b16 %v2204
    %v2605 = vunpack.c.h.b16 %v2204
    %v2606 = vunpack.c.l.b16 %v2205
    %v2607 = vunpack.c.h.b16 %v2205
    %v2608 = vunpack.c.l.b16 %v2206
    %v2609 = vunpack.c.h.b16 %v2206
    %v2610 = vunpack.c.l.b16 %v2207
    %v2611 = vunpack.c.h.b16 %v2207
    %v2612 = vunpack.c.l.b16 %v2208
    %v2613 = vunpack.c.h.b16 %v2208
    %v2614 = vunpack.c.l.b16 %v2209
    %v2615 = vunpack.c.h.b16 %v2209
    %v2616 = vpack.c.b16 %v2364, %v2360
    %v2617 = vpack.c.b16 %v2365, %v2361
    %v2618 = vpack.c.b16 %v2366, %v2362
    %v2619 = vpack.c.b16 %v2367, %v2363
    %v2620 = vpack.c.b16 %v2372, %v2368
    %v2621 = vpack.c.b16 %v2373, %v2369
    %v2622 = vpack.c.b16 %v2374, %v2370
    %v2623 = vpack.c.b16 %v2375, %v2371
    %v2624 = vpack.c.b16 %v2380, %v2376
    %v2625 = vpack.c.b16 %v2381, %v2377
    %v2626 = vpack.c.b16 %v2382, %v2378
    %v2627 = vpack.c.b16 %v2383, %v2379
    %v2628 = vpack.c.b16 %v2388, %v2384
    %v2629 = vpack.c.b16 %v2389, %v2385
    %v2630 = vpack.c.b16 %v2390, %v2386
    %v2631 = vpack.c.b16 %v2391, %v2387
    %v2632 = vpack.c.b16 %v2396, %v2392
    %v2633 = vpack.c.b16 %v2397, %v2393
    %v2634 = vpack.c.b16 %v2398, %v2394
    %v2635 = vpack.c.b16 %v2399, %v2395
    %v2636 = vpack.c.b16 %v2404, %v2400
    %v2637 = vpack.c.b16 %v2405, %v2401
    %v2638 = vpack.c.b16 %v2406, %v2402
    %v2639 = vpack.c.b16 %v2407, %v2403
    %v2640 = vpack.c.b16 %v2412, %v2408
    %v2641 = vpack.c.b16 %v2413, %v2409
    %v2642 = vpack.c.b16 %v2414, %v2410
    %v2643 = vpack.c.b16 %v2415, %v2411
    %v2644 = vpack.c.b16 %v2420, %v2416
    %v2645 = vpack.c.b16 %v2421, %v2417
    %v2646 = vpack.c.b16 %v2422, %v2418
    %v2647 = vpack.c.b16 %v2423, %v2419
    %v2648 = vpack.c.b16 %v2428, %v2424
    %v2649 = vpack.c.b16 %v2429, %v2425
    %v2650 = vpack.c.b16 %v2430, %v2426
    %v2651 = vpack.c.b16 %v2431, %v2427
    %v2652 = vpack.c.b16 %v2436, %v2432
    %v2653 = vpack.c.b16 %v2437, %v2433
    %v2654 = vpack.c.b16 %v2438, %v2434
    %v2655 = vpack.c.b16 %v2439, %v2435
    %v2656 = vpack.c.b16 %v2444, %v2440
    %v2657 = vpack.c.b16 %v2445, %v2441
    %v2658 = vpack.c.b16 %v2446, %v2442
    %v2659 = vpack.c.b16 %v2447, %v2443
    %v2660 = vpack.c.b16 %v2452, %v2448
    %v2661 = vpack.c.b16 %v2453, %v2449
    %v2662 = vpack.c.b16 %v2454, %v2450
    %v2663 = vpack.c.b16 %v2455, %v2451
    %v2664 = vpack.c.b16 %v2460, %v2456
    %v2665 = vpack.c.b16 %v2461, %v2457
    %v2666 = vpack.c.b16 %v2462, %v2458
    %v2667 = vpack.c.b16 %v2463, %v2459
    %v2668 = vpack.c.b16 %v2468, %v2464
    %v2669 = vpack.c.b16 %v2469, %v2465
    %v2670 = vpack.c.b16 %v2470, %v2466
    %v2671 = vpack.c.b16 %v2471, %v2467
    %v2672 = vpack.c.b16 %v2476, %v2472
    %v2673 = vpack.c.b16 %v2477, %v2473
    %v2674 = vpack.c.b16 %v2478, %v2474
    %v2675 = vpack.c.b16 %v2479, %v2475
    %v2676 = vpack.c.b16 %v2484, %v2480
    %v2677 = vpack.c.b16 %v2485, %v2481
    %v2678 = vpack.c.b16 %v2486, %v2482
    %v2679 = vpack.c.b16 %v2487, %v2483
    %v2680 = vpack.c.b16 %v2492, %v2488
    %v2681 = vpack.c.b16 %v2493, %v2489
    %v2682 = vpack.c.b16 %v2494, %v2490
    %v2683 = vpack.c.b16 %v2495, %v2491
    %v2684 = vpack.c.b16 %v2500, %v2496
    %v2685 = vpack.c.b16 %v2501, %v2497
    %v2686 = vpack.c.b16 %v2502, %v2498
    %v2687 = vpack.c.b16 %v2503, %v2499
    %v2688 = vpack.c.b16 %v2508, %v2504
    %v2689 = vpack.c.b16 %v2509, %v2505
    %v2690 = vpack.c.b16 %v2510, %v2506
    %v2691 = vpack.c.b16 %v2511, %v2507
    %v2692 = vpack.c.b16 %v2516, %v2512
    %v2693 = vpack.c.b16 %v2517, %v2513
    %v2694 = vpack.c.b16 %v2518, %v2514
    %v2695 = vpack.c.b16 %v2519, %v2515
    %v2696 = vpack.c.b16 %v2524, %v2520
    %v2697 = vpack.c.b16 %v2525, %v2521
    %v2698 = vpack.c.b16 %v2526, %v2522
    %v2699 = vpack.c.b16 %v2527, %v2523
    %v2700 = vpack.c.b16 %v2532, %v2528
    %v2701 = vpack.c.b16 %v2533, %v2529
    %v2702 = vpack.c.b16 %v2534, %v2530
    %v2703 = vpack.c.b16 %v2535, %v2531
    %v2704 = vpack.c.b16 %v2540, %v2536
    %v2705 = vpack.c.b16 %v2541, %v2537
    %v2706 = vpack.c.b16 %v2542, %v2538
    %v2707 = vpack.c.b16 %v2543, %v2539
    %v2708 = vpack.c.b16 %v2548, %v2544
    %v2709 = vpack.c.b16 %v2549, %v2545
    %v2710 = vpack.c.b16 %v2550, %v2546
    %v2711 = vpack.c.b16 %v2551, %v2547
    %v2712 = vpack.c.b16 %v2556, %v2552
    %v2713 = vpack.c.b16 %v2557, %v2553
    %v2714 = vpack.c.b16 %v2558, %v2554
    %v2715 = vpack.c.b16 %v2559, %v2555
    %v2716 = vpack.c.b16 %v2564, %v2560
    %v2717 = vpack.c.b16 %v2565, %v2561
    %v2718 = vpack.c.b16 %v2566, %v2562
    %v2719 = vpack.c.b16 %v2567, %v2563
    %v2720 = vpack.c.b16 %v2572, %v2568
    %v2721 = vpack.c.b16 %v2573, %v2569
    %v2722 = vpack.c.b16 %v2574, %v2570
    %v2723 = vpack.c.b16 %v2575, %v2571
    %v2724 = vpack.c.b16 %v2580, %v2576
    %v2725 = vpack.c.b16 %v2581, %v2577
    %v2726 = vpack.c.b16 %v2582, %v2578
    %v2727 = vpack.c.b16 %v2583, %v2579
    %v2728 = vpack.c.b16 %v2588, %v2584
    %v2729 = vpack.c.b16 %v2589, %v2585
    %v2730 = vpack.c.b16 %v2590, %v2586
    %v2731 = vpack.c.b16 %v2591, %v2587
    %v2732 = vpack.c.b16 %v2596, %v2592
    %v2733 = vpack.c.b16 %v2597, %v2593
    %v2734 = vpack.c.b16 %v2598, %v2594
    %v2735 = vpack.c.b16 %v2599, %v2595
    %v2736 = vpack.c.b16 %v2604, %v2600
    %v2737 = vpack.c.b16 %v2605, %v2601
    %v2738 = vpack.c.b16 %v2606, %v2602
    %v2739 = vpack.c.b16 %v2607, %v2603
    %v2740 = vpack.c.b16 %v2612, %v2608
    %v2741 = vpack.c.b16 %v2613, %v2609
    %v2742 = vpack.c.b16 %v2614, %v2610
    %v2743 = vpack.c.b16 %v2615, %v2611
    %2872 = vmatprep.subr.bf16.mxu0 %v2617
    %2873 = vmatpush1.bf16.msra.mxu0 %v2616
    %2874 = vmatprep.subr.bf16.mxu0 %v2621
    %2875 = vmatpush1.bf16.msra.mxu0 %v2620
    %2876 = vmatprep.subr.bf16.mxu0 %v2625
    %2877 = vmatpush1.bf16.msra.mxu0 %v2624
    %2878 = vmatprep.subr.bf16.mxu0 %v2629
    %2879 = vmatpush1.bf16.msra.mxu0 %v2628
    %2880 = vmatprep.subr.bf16.mxu0 %v2633
    %2881 = vmatpush1.bf16.msra.mxu0 %v2632
    %2882 = vmatprep.subr.bf16.mxu0 %v2637
    %2883 = vmatpush1.bf16.msra.mxu0 %v2636
    %2884 = vmatprep.subr.bf16.mxu0 %v2641
    %2885 = vmatpush1.bf16.msra.mxu0 %v2640
    %2886 = vmatprep.subr.bf16.mxu0 %v2645
    %2887 = vmatpush1.bf16.msra.mxu0 %v2644
    %2888 = vmatprep.subr.bf16.mxu0 %v2649
    %2889 = vmatpush1.bf16.msra.mxu0 %v2648
    %2890 = vmatprep.subr.bf16.mxu0 %v2653
    %2891 = vmatpush1.bf16.msra.mxu0 %v2652
    %2892 = vmatprep.subr.bf16.mxu0 %v2657
    %2893 = vmatpush1.bf16.msra.mxu0 %v2656
    %2894 = vmatprep.subr.bf16.mxu0 %v2661
    %2895 = vmatpush1.bf16.msra.mxu0 %v2660
    %2896 = vmatprep.subr.bf16.mxu0 %v2665
    %2897 = vmatpush1.bf16.msra.mxu0 %v2664
    %2898 = vmatprep.subr.bf16.mxu0 %v2669
    %2899 = vmatpush1.bf16.msra.mxu0 %v2668
    %2900 = vmatprep.subr.bf16.mxu0 %v2673
    %2901 = vmatpush1.bf16.msra.mxu0 %v2672
    %2902 = vmatprep.subr.bf16.mxu0 %v2677
    %2903 = vmatpush1.bf16.msra.mxu0 %v2676
    %2904 = vmatprep.mubr.bf16.mxu0 %v2079
    %2905 = vmatmul.mubr.bf16.gmra.mrb[0].mxu0 %v2078
    %v2906 = vpop.f32.mrb[0].mxu0
    %v2907 = vadd.f32 %v2215, %v2906
    %v2908 = vpop.f32.mrb[0].mxu0
    %v2909 = vadd.f32 %v2219, %v2908
    %v2910 = vpop.f32.mrb[0].mxu0
    %v2911 = vpop.f32.mrb[0].mxu0
    %2912 = vdwg.mxu0
    %2913 = vmatprep.subr.bf16.mxu0 %v2681
    %2914 = vmatpush1.bf16.msra.mxu0 %v2680
    %2915 = vmatprep.subr.bf16.mxu0 %v2685
    %2916 = vmatpush1.bf16.msra.mxu0 %v2684
    %2917 = vmatprep.subr.bf16.mxu0 %v2689
    %2918 = vmatpush1.bf16.msra.mxu0 %v2688
    %2919 = vmatprep.subr.bf16.mxu0 %v2693
    %2920 = vmatpush1.bf16.msra.mxu0 %v2692
    %2921 = vmatprep.subr.bf16.mxu0 %v2697
    %2922 = vmatpush1.bf16.msra.mxu0 %v2696
    %2923 = vmatprep.subr.bf16.mxu0 %v2701
    %2924 = vmatpush1.bf16.msra.mxu0 %v2700
    %2925 = vmatprep.subr.bf16.mxu0 %v2705
    %2926 = vmatpush1.bf16.msra.mxu0 %v2704
    %2927 = vmatprep.subr.bf16.mxu0 %v2709
    %2928 = vmatpush1.bf16.msra.mxu0 %v2708
    %2929 = vmatprep.subr.bf16.mxu0 %v2713
    %2930 = vmatpush1.bf16.msra.mxu0 %v2712
    %2931 = vmatprep.subr.bf16.mxu0 %v2717
    %2932 = vmatpush1.bf16.msra.mxu0 %v2716
    %2933 = vmatprep.subr.bf16.mxu0 %v2721
    %2934 = vmatpush1.bf16.msra.mxu0 %v2720
    %2935 = vmatprep.subr.bf16.mxu0 %v2725
    %2936 = vmatpush1.bf16.msra.mxu0 %v2724
    %2937 = vmatprep.subr.bf16.mxu0 %v2729
    %2938 = vmatpush1.bf16.msra.mxu0 %v2728
    %2939 = vmatprep.subr.bf16.mxu0 %v2733
    %2940 = vmatpush1.bf16.msra.mxu0 %v2732
    %2941 = vmatprep.subr.bf16.mxu0 %v2737
    %2942 = vmatpush1.bf16.msra.mxu0 %v2736
    %2943 = vmatprep.subr.bf16.mxu0 %v2741
    %2944 = vmatpush1.bf16.msra.mxu0 %v2740
    %2945 = vmatprep.mubr.bf16.mxu0 %v2081
    %2946 = vmatmul.mubr.bf16.gmra.mrb[0].mxu0 %v2080
    %v2947 = vpop.f32.mrb[0].mxu0
    %v2948 = vadd.f32 %v2907, %v2947
    %v2949 = vpop.f32.mrb[0].mxu0
    %v2950 = vadd.f32 %v2909, %v2949
    %v2951 = vpop.f32.mrb[0].mxu0
    %v2952 = vpop.f32.mrb[0].mxu0
    %2953 = vdwg.mxu0
    %2954 = vmatprep.subr.bf16.mxu0 %v2619
    %2955 = vmatpush1.bf16.msra.mxu0 %v2618
    %2956 = vmatprep.subr.bf16.mxu0 %v2623
    %2957 = vmatpush1.bf16.msra.mxu0 %v2622
    %2958 = vmatprep.subr.bf16.mxu0 %v2627
    %2959 = vmatpush1.bf16.msra.mxu0 %v2626
    %2960 = vmatprep.subr.bf16.mxu0 %v2631
    %2961 = vmatpush1.bf16.msra.mxu0 %v2630
    %2962 = vmatprep.subr.bf16.mxu0 %v2635
    %2963 = vmatpush1.bf16.msra.mxu0 %v2634
    %2964 = vmatprep.subr.bf16.mxu0 %v2639
    %2965 = vmatpush1.bf16.msra.mxu0 %v2638
    %2966 = vmatprep.subr.bf16.mxu0 %v2643
    %2967 = vmatpush1.bf16.msra.mxu0 %v2642
    %2968 = vmatprep.subr.bf16.mxu0 %v2647
    %2969 = vmatpush1.bf16.msra.mxu0 %v2646
    %2970 = vmatprep.subr.bf16.mxu0 %v2651
    %2971 = vmatpush1.bf16.msra.mxu0 %v2650
    %2972 = vmatprep.subr.bf16.mxu0 %v2655
    %2973 = vmatpush1.bf16.msra.mxu0 %v2654
    %2974 = vmatprep.subr.bf16.mxu0 %v2659
    %2975 = vmatpush1.bf16.msra.mxu0 %v2658
    %2976 = vmatprep.subr.bf16.mxu0 %v2663
    %2977 = vmatpush1.bf16.msra.mxu0 %v2662
    %2978 = vmatprep.subr.bf16.mxu0 %v2667
    %2979 = vmatpush1.bf16.msra.mxu0 %v2666
    %2980 = vmatprep.subr.bf16.mxu0 %v2671
    %2981 = vmatpush1.bf16.msra.mxu0 %v2670
    %2982 = vmatprep.subr.bf16.mxu0 %v2675
    %2983 = vmatpush1.bf16.msra.mxu0 %v2674
    %2984 = vmatprep.subr.bf16.mxu0 %v2679
    %2985 = vmatpush1.bf16.msra.mxu0 %v2678
    %2986 = vmatprep.mubr.bf16.mxu0 %v2079
    %2987 = vmatmul.mubr.bf16.gmra.mrb[0].mxu0 %v2078
    %v2988 = vpop.f32.mrb[0].mxu0
    %v2989 = vadd.f32 %v2223, %v2988
    %v2990 = vpop.f32.mrb[0].mxu0
    %v2991 = vadd.f32 %v2227, %v2990
    %v2992 = vpop.f32.mrb[0].mxu0
    %v2993 = vpop.f32.mrb[0].mxu0
    %2994 = vdwg.mxu0
    %2995 = vmatprep.subr.bf16.mxu0 %v2683
    %2996 = vmatpush1.bf16.msra.mxu0 %v2682
    %2997 = vmatprep.subr.bf16.mxu0 %v2687
    %2998 = vmatpush1.bf16.msra.mxu0 %v2686
    %2999 = vmatprep.subr.bf16.mxu0 %v2691
    %3000 = vmatpush1.bf16.msra.mxu0 %v2690
    %3001 = vmatprep.subr.bf16.mxu0 %v2695
    %3002 = vmatpush1.bf16.msra.mxu0 %v2694
    %3003 = vmatprep.subr.bf16.mxu0 %v2699
    %3004 = vmatpush1.bf16.msra.mxu0 %v2698
    %3005 = vmatprep.subr.bf16.mxu0 %v2703
    %3006 = vmatpush1.bf16.msra.mxu0 %v2702
    %3007 = vmatprep.subr.bf16.mxu0 %v2707
    %3008 = vmatpush1.bf16.msra.mxu0 %v2706
    %3009 = vmatprep.subr.bf16.mxu0 %v2711
    %3010 = vmatpush1.bf16.msra.mxu0 %v2710
    %3011 = vmatprep.subr.bf16.mxu0 %v2715
    %3012 = vmatpush1.bf16.msra.mxu0 %v2714
    %3013 = vmatprep.subr.bf16.mxu0 %v2719
    %3014 = vmatpush1.bf16.msra.mxu0 %v2718
    %3015 = vmatprep.subr.bf16.mxu0 %v2723
    %3016 = vmatpush1.bf16.msra.mxu0 %v2722
    %3017 = vmatprep.subr.bf16.mxu0 %v2727
    %3018 = vmatpush1.bf16.msra.mxu0 %v2726
    %3019 = vmatprep.subr.bf16.mxu0 %v2731
    %3020 = vmatpush1.bf16.msra.mxu0 %v2730
    %3021 = vmatprep.subr.bf16.mxu0 %v2735
    %3022 = vmatpush1.bf16.msra.mxu0 %v2734
    %3023 = vmatprep.subr.bf16.mxu0 %v2739
    %3024 = vmatpush1.bf16.msra.mxu0 %v2738
    %3025 = vmatprep.subr.bf16.mxu0 %v2743
    %3026 = vmatpush1.bf16.msra.mxu0 %v2742
    %3027 = vmatprep.mubr.bf16.mxu0 %v2081
    %3028 = vmatmul.mubr.bf16.gmra.mrb[0].mxu0 %v2080
    %v3029 = vpop.f32.mrb[0].mxu0
    %v3030 = vadd.f32 %v2989, %v3029
    %v3031 = vpop.f32.mrb[0].mxu0
    %v3032 = vadd.f32 %v2991, %v3031
    %v3033 = vpop.f32.mrb[0].mxu0
    %v3034 = vpop.f32.mrb[0].mxu0
    %3035 = vdwg.mxu0
    %v3036 = vmax.f32 %v2948, 0.0
    %v3037 = vmax.f32 %v2950, 0.0
    %v3038 = vmax.f32 %v3030, 0.0
    %v3039 = vmax.f32 %v3032, 0.0
    %v3040 = vpack.c.bf16 %v3036, %v3036
    %v3041 = vpack.c.bf16 %v3037, %v3037
    %v3042 = vpack.c.bf16 %v3038, %v3038
    %v3043 = vpack.c.bf16 %v3039, %v3039
    %v3044 = vld [vmem:[#allocation6] sm:$0xf]
    %v3045 = vld [vmem:[#allocation6 + $0x4] sm:$0xf]
    %v3046 = vld [vmem:[#allocation6 + $0x8] sm:$0xf]
    %v3047 = vld [vmem:[#allocation6 + $0xc] sm:$0xf]
    %v3048 = vld [vmem:[#allocation6 + $0x10] sm:$0xf]
    %v3049 = vld [vmem:[#allocation6 + $0x14] sm:$0xf]
    %v3050 = vld [vmem:[#allocation6 + $0x18] sm:$0xf]
    %v3051 = vld [vmem:[#allocation6 + $0x1c] sm:$0xf]
    %v3052 = vld [vmem:[#allocation6 + $0x20] sm:$0xf]
    %v3053 = vld [vmem:[#allocation6 + $0x24] sm:$0xf]
    %v3054 = vld [vmem:[#allocation6 + $0x28] sm:$0xf]
    %v3055 = vld [vmem:[#allocation6 + $0x2c] sm:$0xf]
    %v3056 = vld [vmem:[#allocation6 + $0x30] sm:$0xf]
    %v3057 = vld [vmem:[#allocation6 + $0x34] sm:$0xf]
    %v3058 = vld [vmem:[#allocation6 + $0x38] sm:$0xf]
    %v3059 = vld [vmem:[#allocation6 + $0x3c] sm:$0xf]
    %v3060 = vld [vmem:[#allocation6 + $0x40] sm:$0xf]
    %v3061 = vld [vmem:[#allocation6 + $0x44] sm:$0xf]
    %v3062 = vld [vmem:[#allocation6 + $0x48] sm:$0xf]
    %v3063 = vld [vmem:[#allocation6 + $0x4c] sm:$0xf]
    %v3064 = vld [vmem:[#allocation6 + $0x50] sm:$0xf]
    %v3065 = vld [vmem:[#allocation6 + $0x54] sm:$0xf]
    %v3066 = vld [vmem:[#allocation6 + $0x58] sm:$0xf]
    %v3067 = vld [vmem:[#allocation6 + $0x5c] sm:$0xf]
    %v3068 = vld [vmem:[#allocation6 + $0x60] sm:$0xf]
    %v3069 = vld [vmem:[#allocation6 + $0x64] sm:$0xf]
    %v3070 = vld [vmem:[#allocation6 + $0x68] sm:$0xf]
    %v3071 = vld [vmem:[#allocation6 + $0x6c] sm:$0xf]
    %v3072 = vld [vmem:[#allocation6 + $0x70] sm:$0xf]
    %v3073 = vld [vmem:[#allocation6 + $0x74] sm:$0xf]
    %v3074 = vld [vmem:[#allocation6 + $0x78] sm:$0xf]
    %v3075 = vld [vmem:[#allocation6 + $0x7c] sm:$0xf]
    %v3076 = vld [vmem:[#allocation6 + $0x80] sm:$0xf]
    %v3077 = vld [vmem:[#allocation6 + $0x84] sm:$0xf]
    %v3078 = vld [vmem:[#allocation6 + $0x88] sm:$0xf]
    %v3079 = vld [vmem:[#allocation6 + $0x8c] sm:$0xf]
    %v3080 = vld [vmem:[#allocation6 + $0x90] sm:$0xf]
    %v3081 = vld [vmem:[#allocation6 + $0x94] sm:$0xf]
    %v3082 = vld [vmem:[#allocation6 + $0x98] sm:$0xf]
    %v3083 = vld [vmem:[#allocation6 + $0x9c] sm:$0xf]
    %v3084 = vld [vmem:[#allocation6 + $0xa0] sm:$0xf]
    %v3085 = vld [vmem:[#allocation6 + $0xa4] sm:$0xf]
    %v3086 = vld [vmem:[#allocation6 + $0xa8] sm:$0xf]
    %v3087 = vld [vmem:[#allocation6 + $0xac] sm:$0xf]
    %v3088 = vld [vmem:[#allocation6 + $0xb0] sm:$0xf]
    %v3089 = vld [vmem:[#allocation6 + $0xb4] sm:$0xf]
    %v3090 = vld [vmem:[#allocation6 + $0xb8] sm:$0xf]
    %v3091 = vld [vmem:[#allocation6 + $0xbc] sm:$0xf]
    %v3092 = vld [vmem:[#allocation6 + $0xc0] sm:$0xf]
    %v3093 = vld [vmem:[#allocation6 + $0xc4] sm:$0xf]
    %v3094 = vld [vmem:[#allocation6 + $0xc8] sm:$0xf]
    %v3095 = vld [vmem:[#allocation6 + $0xcc] sm:$0xf]
    %v3096 = vld [vmem:[#allocation6 + $0xd0] sm:$0xf]
    %v3097 = vld [vmem:[#allocation6 + $0xd4] sm:$0xf]
    %v3098 = vld [vmem:[#allocation6 + $0xd8] sm:$0xf]
    %v3099 = vld [vmem:[#allocation6 + $0xdc] sm:$0xf]
    %v3100 = vld [vmem:[#allocation6 + $0xe0] sm:$0xf]
    %v3101 = vld [vmem:[#allocation6 + $0xe4] sm:$0xf]
    %v3102 = vld [vmem:[#allocation6 + $0xe8] sm:$0xf]
    %v3103 = vld [vmem:[#allocation6 + $0xec] sm:$0xf]
    %v3104 = vld [vmem:[#allocation6 + $0xf0] sm:$0xf]
    %v3105 = vld [vmem:[#allocation6 + $0xf4] sm:$0xf]
    %v3106 = vld [vmem:[#allocation6 + $0xf8] sm:$0xf]
    %v3107 = vld [vmem:[#allocation6 + $0xfc] sm:$0xf]
    %v3108 = vld [vmem:[%s6] sm:$0x1]
    %v3110 = vlaneseq
    %v3111 = vshrl.u32 %v3110, 7
    %v3112 = vsub.s32 0, %v3111
    %v3113 = vrot.slane %v3108, %v3112
    %v3179 = vunpack.c.l.b16 %v3044
    %v3180 = vunpack.c.l.b16 %v3045
    %v3181 = vunpack.c.l.b16 %v3046
    %v3182 = vunpack.c.l.b16 %v3047
    %v3183 = vunpack.c.l.b16 %v3048
    %v3184 = vunpack.c.l.b16 %v3049
    %v3185 = vunpack.c.l.b16 %v3050
    %v3186 = vunpack.c.l.b16 %v3051
    %v3187 = vunpack.c.l.b16 %v3052
    %v3188 = vunpack.c.l.b16 %v3053
    %v3189 = vunpack.c.l.b16 %v3054
    %v3190 = vunpack.c.l.b16 %v3055
    %v3191 = vunpack.c.l.b16 %v3056
    %v3192 = vunpack.c.l.b16 %v3057
    %v3193 = vunpack.c.l.b16 %v3058
    %v3194 = vunpack.c.l.b16 %v3059
    %v3195 = vunpack.c.l.b16 %v3060
    %v3196 = vunpack.c.l.b16 %v3061
    %v3197 = vunpack.c.l.b16 %v3062
    %v3198 = vunpack.c.l.b16 %v3063
    %v3199 = vunpack.c.l.b16 %v3064
    %v3200 = vunpack.c.l.b16 %v3065
    %v3201 = vunpack.c.l.b16 %v3066
    %v3202 = vunpack.c.l.b16 %v3067
    %v3203 = vunpack.c.l.b16 %v3068
    %v3204 = vunpack.c.l.b16 %v3069
    %v3205 = vunpack.c.l.b16 %v3070
    %v3206 = vunpack.c.l.b16 %v3071
    %v3207 = vunpack.c.l.b16 %v3072
    %v3208 = vunpack.c.l.b16 %v3073
    %v3209 = vunpack.c.l.b16 %v3074
    %v3210 = vunpack.c.l.b16 %v3075
    %v3211 = vunpack.c.l.b16 %v3076
    %v3212 = vunpack.c.l.b16 %v3077
    %v3213 = vunpack.c.l.b16 %v3078
    %v3214 = vunpack.c.l.b16 %v3079
    %v3215 = vunpack.c.l.b16 %v3080
    %v3216 = vunpack.c.l.b16 %v3081
    %v3217 = vunpack.c.l.b16 %v3082
    %v3218 = vunpack.c.l.b16 %v3083
    %v3219 = vunpack.c.l.b16 %v3084
    %v3220 = vunpack.c.l.b16 %v3085
    %v3221 = vunpack.c.l.b16 %v3086
    %v3222 = vunpack.c.l.b16 %v3087
    %v3223 = vunpack.c.l.b16 %v3088
    %v3224 = vunpack.c.l.b16 %v3089
    %v3225 = vunpack.c.l.b16 %v3090
    %v3226 = vunpack.c.l.b16 %v3091
    %v3227 = vunpack.c.l.b16 %v3092
    %v3228 = vunpack.c.l.b16 %v3093
    %v3229 = vunpack.c.l.b16 %v3094
    %v3230 = vunpack.c.l.b16 %v3095
    %v3231 = vunpack.c.l.b16 %v3096
    %v3232 = vunpack.c.l.b16 %v3097
    %v3233 = vunpack.c.l.b16 %v3098
    %v3234 = vunpack.c.l.b16 %v3099
    %v3235 = vunpack.c.l.b16 %v3100
    %v3236 = vunpack.c.l.b16 %v3101
    %v3237 = vunpack.c.l.b16 %v3102
    %v3238 = vunpack.c.l.b16 %v3103
    %v3239 = vunpack.c.l.b16 %v3104
    %v3240 = vunpack.c.l.b16 %v3105
    %v3241 = vunpack.c.l.b16 %v3106
    %v3242 = vunpack.c.l.b16 %v3107
    %v3243 = vpack.c.b16 %v3180, %v3179
    %v3244 = vpack.c.b16 %v3182, %v3181
    %v3245 = vpack.c.b16 %v3184, %v3183
    %v3246 = vpack.c.b16 %v3186, %v3185
    %v3247 = vpack.c.b16 %v3188, %v3187
    %v3248 = vpack.c.b16 %v3190, %v3189
    %v3249 = vpack.c.b16 %v3192, %v3191
    %v3250 = vpack.c.b16 %v3194, %v3193
    %v3251 = vpack.c.b16 %v3196, %v3195
    %v3252 = vpack.c.b16 %v3198, %v3197
    %v3253 = vpack.c.b16 %v3200, %v3199
    %v3254 = vpack.c.b16 %v3202, %v3201
    %v3255 = vpack.c.b16 %v3204, %v3203
    %v3256 = vpack.c.b16 %v3206, %v3205
    %v3257 = vpack.c.b16 %v3208, %v3207
    %v3258 = vpack.c.b16 %v3210, %v3209
    %v3259 = vpack.c.b16 %v3212, %v3211
    %v3260 = vpack.c.b16 %v3214, %v3213
    %v3261 = vpack.c.b16 %v3216, %v3215
    %v3262 = vpack.c.b16 %v3218, %v3217
    %v3263 = vpack.c.b16 %v3220, %v3219
    %v3264 = vpack.c.b16 %v3222, %v3221
    %v3265 = vpack.c.b16 %v3224, %v3223
    %v3266 = vpack.c.b16 %v3226, %v3225
    %v3267 = vpack.c.b16 %v3228, %v3227
    %v3268 = vpack.c.b16 %v3230, %v3229
    %v3269 = vpack.c.b16 %v3232, %v3231
    %v3270 = vpack.c.b16 %v3234, %v3233
    %v3271 = vpack.c.b16 %v3236, %v3235
    %v3272 = vpack.c.b16 %v3238, %v3237
    %v3273 = vpack.c.b16 %v3240, %v3239
    %v3274 = vpack.c.b16 %v3242, %v3241
    %3307 = vmatprep.subr.bf16.mxu0 0
    %3308 = vmatpush1.bf16.msra.mxu0 %v3243
    %3309 = vmatprep.subr.bf16.mxu0 0
    %3310 = vmatpush1.bf16.msra.mxu0 %v3244
    %3311 = vmatprep.subr.bf16.mxu0 0
    %3312 = vmatpush1.bf16.msra.mxu0 %v3245
    %3313 = vmatprep.subr.bf16.mxu0 0
    %3314 = vmatpush1.bf16.msra.mxu0 %v3246
    %3315 = vmatprep.subr.bf16.mxu0 0
    %3316 = vmatpush1.bf16.msra.mxu0 %v3247
    %3317 = vmatprep.subr.bf16.mxu0 0
    %3318 = vmatpush1.bf16.msra.mxu0 %v3248
    %3319 = vmatprep.subr.bf16.mxu0 0
    %3320 = vmatpush1.bf16.msra.mxu0 %v3249
    %3321 = vmatprep.subr.bf16.mxu0 0
    %3322 = vmatpush1.bf16.msra.mxu0 %v3250
    %3323 = vmatprep.subr.bf16.mxu0 0
    %3324 = vmatpush1.bf16.msra.mxu0 %v3251
    %3325 = vmatprep.subr.bf16.mxu0 0
    %3326 = vmatpush1.bf16.msra.mxu0 %v3252
    %3327 = vmatprep.subr.bf16.mxu0 0
    %3328 = vmatpush1.bf16.msra.mxu0 %v3253
    %3329 = vmatprep.subr.bf16.mxu0 0
    %3330 = vmatpush1.bf16.msra.mxu0 %v3254
    %3331 = vmatprep.subr.bf16.mxu0 0
    %3332 = vmatpush1.bf16.msra.mxu0 %v3255
    %3333 = vmatprep.subr.bf16.mxu0 0
    %3334 = vmatpush1.bf16.msra.mxu0 %v3256
    %3335 = vmatprep.subr.bf16.mxu0 0
    %3336 = vmatpush1.bf16.msra.mxu0 %v3257
    %3337 = vmatprep.subr.bf16.mxu0 0
    %3338 = vmatpush1.bf16.msra.mxu0 %v3258
    %3339 = vmatprep.mubr.bf16.mxu0 %v3041
    %3340 = vmatmul.mubr.bf16.gmra.mrb[0].mxu0 %v3040
    %v3341 = vpop.f32.mrb[0].mxu0
    %v3342 = vadd.f32 %v3113, %v3341
    %v3343 = vpop.f32.mrb[0].mxu0
    %v3344 = vpop.f32.mrb[0].mxu0
    %v3345 = vpop.f32.mrb[0].mxu0
    %3346 = vdwg.mxu0
    %3347 = vmatprep.subr.bf16.mxu0 0
    %3348 = vmatpush1.bf16.msra.mxu0 %v3259
    %3349 = vmatprep.subr.bf16.mxu0 0
    %3350 = vmatpush1.bf16.msra.mxu0 %v3260
    %3351 = vmatprep.subr.bf16.mxu0 0
    %3352 = vmatpush1.bf16.msra.mxu0 %v3261
    %3353 = vmatprep.subr.bf16.mxu0 0
    %3354 = vmatpush1.bf16.msra.mxu0 %v3262
    %3355 = vmatprep.subr.bf16.mxu0 0
    %3356 = vmatpush1.bf16.msra.mxu0 %v3263
    %3357 = vmatprep.subr.bf16.mxu0 0
    %3358 = vmatpush1.bf16.msra.mxu0 %v3264
    %3359 = vmatprep.subr.bf16.mxu0 0
    %3360 = vmatpush1.bf16.msra.mxu0 %v3265
    %3361 = vmatprep.subr.bf16.mxu0 0
    %3362 = vmatpush1.bf16.msra.mxu0 %v3266
    %3363 = vmatprep.subr.bf16.mxu0 0
    %3364 = vmatpush1.bf16.msra.mxu0 %v3267
    %3365 = vmatprep.subr.bf16.mxu0 0
    %3366 = vmatpush1.bf16.msra.mxu0 %v3268
    %3367 = vmatprep.subr.bf16.mxu0 0
    %3368 = vmatpush1.bf16.msra.mxu0 %v3269
    %3369 = vmatprep.subr.bf16.mxu0 0
    %3370 = vmatpush1.bf16.msra.mxu0 %v3270
    %3371 = vmatprep.subr.bf16.mxu0 0
    %3372 = vmatpush1.bf16.msra.mxu0 %v3271
    %3373 = vmatprep.subr.bf16.mxu0 0
    %3374 = vmatpush1.bf16.msra.mxu0 %v3272
    %3375 = vmatprep.subr.bf16.mxu0 0
    %3376 = vmatpush1.bf16.msra.mxu0 %v3273
    %3377 = vmatprep.subr.bf16.mxu0 0
    %3378 = vmatpush1.bf16.msra.mxu0 %v3274
    %3379 = vmatprep.mubr.bf16.mxu0 %v3043
    %3380 = vmatmul.mubr.bf16.gmra.mrb[0].mxu0 %v3042
    %v3381 = vpop.f32.mrb[0].mxu0
    %v3382 = vadd.f32 %v3342, %v3381
    %v3383 = vpop.f32.mrb[0].mxu0
    %v3384 = vpop.f32.mrb[0].mxu0
    %v3385 = vpop.f32.mrb[0].mxu0
    %3386 = vdwg.mxu0
    %v3387 = vmax.f32 %v3382, 0.0
    %3388 = vst [vmem:[%s9] sm:$0xff] %v3387
    %v3389 = vpack.c.bf16 %v3387, %v3387
    %v3390 = vld [vmem:[%s7] sm:$0xf]
    %v3391 = vld [vmem:[%s7 + $0x4] sm:$0xf]
    %v3392 = vld [vmem:[%s7 + $0x8] sm:$0xf]
    %v3393 = vld [vmem:[%s7 + $0xc] sm:$0xf]
    %v3394 = vld [vmem:[%s7 + $0x10] sm:$0xf]
    %v3395 = vld [vmem:[%s7 + $0x14] sm:$0xf]
    %v3396 = vld [vmem:[%s7 + $0x18] sm:$0xf]
    %v3397 = vld [vmem:[%s7 + $0x1c] sm:$0xf]
    %v3398 = vld [vmem:[%s7 + $0x20] sm:$0xf]
    %v3399 = vld [vmem:[%s7 + $0x24] sm:$0xf]
    %v3400 = vld [vmem:[%s7 + $0x28] sm:$0xf]
    %v3401 = vld [vmem:[%s7 + $0x2c] sm:$0xf]
    %v3402 = vld [vmem:[%s7 + $0x30] sm:$0xf]
    %v3403 = vld [vmem:[%s7 + $0x34] sm:$0xf]
    %v3404 = vld [vmem:[%s7 + $0x38] sm:$0xf]
    %v3405 = vld [vmem:[%s7 + $0x3c] sm:$0xf]
    %v3406 = vld [vmem:[%s8] sm:$0x1]
    %v3408 = vlaneseq
    %v3409 = vshrl.u32 %v3408, 7
    %v3410 = vsub.s32 0, %v3409
    %v3411 = vrot.slane %v3406, %v3410
    %v3429 = vunpack.c.l.b16 %v3390
    %v3430 = vunpack.c.l.b16 %v3391
    %v3431 = vunpack.c.l.b16 %v3392
    %v3432 = vunpack.c.l.b16 %v3393
    %v3433 = vunpack.c.l.b16 %v3394
    %v3434 = vunpack.c.l.b16 %v3395
    %v3435 = vunpack.c.l.b16 %v3396
    %v3436 = vunpack.c.l.b16 %v3397
    %v3437 = vunpack.c.l.b16 %v3398
    %v3438 = vunpack.c.l.b16 %v3399
    %v3439 = vunpack.c.l.b16 %v3400
    %v3440 = vunpack.c.l.b16 %v3401
    %v3441 = vunpack.c.l.b16 %v3402
    %v3442 = vunpack.c.l.b16 %v3403
    %v3443 = vunpack.c.l.b16 %v3404
    %v3444 = vunpack.c.l.b16 %v3405
    %v3445 = vpack.c.b16 %v3430, %v3429
    %v3446 = vpack.c.b16 %v3432, %v3431
    %v3447 = vpack.c.b16 %v3434, %v3433
    %v3448 = vpack.c.b16 %v3436, %v3435
    %v3449 = vpack.c.b16 %v3438, %v3437
    %v3450 = vpack.c.b16 %v3440, %v3439
    %v3451 = vpack.c.b16 %v3442, %v3441
    %v3452 = vpack.c.b16 %v3444, %v3443
    %3461 = vmatprep.subr.bf16.mxu0 0
    %3462 = vmatpush1.bf16.msra.mxu0 %v3445
    %3463 = vmatprep.subr.bf16.mxu0 0
    %3464 = vmatpush1.bf16.msra.mxu0 %v3446
    %3465 = vmatprep.subr.bf16.mxu0 0
    %3466 = vmatpush1.bf16.msra.mxu0 %v3447
    %3467 = vmatprep.subr.bf16.mxu0 0
    %3468 = vmatpush1.bf16.msra.mxu0 %v3448
    %3469 = vmatprep.subr.bf16.mxu0 0
    %3470 = vmatpush1.bf16.msra.mxu0 %v3449
    %3471 = vmatprep.subr.bf16.mxu0 0
    %3472 = vmatpush1.bf16.msra.mxu0 %v3450
    %3473 = vmatprep.subr.bf16.mxu0 0
    %3474 = vmatpush1.bf16.msra.mxu0 %v3451
    %3475 = vmatprep.subr.bf16.mxu0 0
    %3476 = vmatpush1.bf16.msra.mxu0 %v3452
    %3477 = vmatprep.subr.bf16.mxu0 0
    %3478 = vmatpush1.bf16.msra.mxu0 0
    %3479 = vmatprep.subr.bf16.mxu0 0
    %3480 = vmatpush1.bf16.msra.mxu0 0
    %3481 = vmatprep.subr.bf16.mxu0 0
    %3482 = vmatpush1.bf16.msra.mxu0 0
    %3483 = vmatprep.subr.bf16.mxu0 0
    %3484 = vmatpush1.bf16.msra.mxu0 0
    %3485 = vmatprep.subr.bf16.mxu0 0
    %3486 = vmatpush1.bf16.msra.mxu0 0
    %3487 = vmatprep.subr.bf16.mxu0 0
    %3488 = vmatpush1.bf16.msra.mxu0 0
    %3489 = vmatprep.subr.bf16.mxu0 0
    %3490 = vmatpush1.bf16.msra.mxu0 0
    %3491 = vmatprep.subr.bf16.mxu0 0
    %3492 = vmatpush1.bf16.msra.mxu0 0
    %3493 = vmatprep.mubr.bf16.mxu0 0
    %3494 = vmatmul.mubr.bf16.gmra.mrb[0].mxu0 %v3389
    %v3495 = vpop.f32.mrb[0].mxu0
    %v3496 = vadd.f32 %v3411, %v3495
    %v3497 = vpop.f32.mrb[0].mxu0
    %v3498 = vpop.f32.mrb[0].mxu0
    %v3499 = vpop.f32.mrb[0].mxu0
    %3500 = vdwg.mxu0
    %3501 = vst [vmem:[%s10] sm:$0xff] %v3496
    // Predicated region
    $region50: #{flexible_cnn_forward.1} parent=1 // pred_check
      _
    $region51: #{flexible_cnn_forward.1} parent=1 // pred_check_branch
      %3503 = sbr.rel (0) target = $region53
    $region52: #{flexible_cnn_forward.1} parent=1 // pred_region
      _
    $region53: #{flexible_cnn_forward.1} parent=1 // pred_fallthru
      _
    // Predicated region
    $region54: #{flexible_cnn_forward.1} parent=1 // pred_check
      _
    $region55: #{flexible_cnn_forward.1} parent=1 // pred_check_branch
      %3505 = sbr.rel (0) target = $region57
    $region56: #{flexible_cnn_forward.1} parent=1 // pred_region
      _
    $region57: #{flexible_cnn_forward.1} parent=1 // pred_fallthru
      _
    // Predicated region
    $region58: #{flexible_cnn_forward.1} parent=1 // pred_check
      _
    $region59: #{flexible_cnn_forward.1} parent=1 // pred_check_branch
      %3507 = sbr.rel (0) target = $region61
    $region60: #{flexible_cnn_forward.1} parent=1 // pred_region
      _
    $region61: #{flexible_cnn_forward.1} parent=1 // pred_fallthru
      _
    // Predicated region
    $region62: #{flexible_cnn_forward.1} parent=1 // pred_check
      _
    $region63: #{flexible_cnn_forward.1} parent=1 // pred_check_branch
      %3509 = sbr.rel (0) target = $region65
    $region64: #{flexible_cnn_forward.1} parent=1 // pred_region
      _
    $region65: #{flexible_cnn_forward.1} parent=1 // pred_fallthru
      _
    %3510 = vsyncpa [#allocation3], 1
    %3511 = vsyncpa [#allocation5], 1

</llo_original>
